<compile_context>
chip_gen: v5e
topology: v5e:2x2
jax: 0.10.0
libtpu: 0.0.40
codegen_flags: <defaults>
</compile_context>

<pallas_src>
import functools

import jax
import jax.numpy as jnp
from jax.experimental import pallas as pl
from jax.experimental.pallas import tpu as pltpu

H1 = 508            # torch model's first-linear output width
H1_PAD = 512        # padded to a multiple of 128 (and 256)
BN_EPS = 1e-5
TILE_B = 256        # batch tile: multiple of 256 (v6e/v7x MXU rows), of 128 (v5e)


def _round_up(n, m):
    return ((n + m - 1) // m) * m


# ---------------------------------------------------------------------------
# Pallas kernel: Linear -> [Linear(+folded BN)+Tanh] x3 -> Linear
# One grid step processes a [TILE_B, L*E] slab; weights stay VMEM-resident.
# ---------------------------------------------------------------------------
def _classifier_kernel(
    x_ref,                 # [TB, L*E]  bf16
    w1_ref, b1_ref,        # [L*E, 512] bf16, [1, 512] f32   (cols >= 508: zero)
    w2_ref, b2_ref,        # [512, 256] bf16, [1, 256] f32   (BN folded in)
    w3_ref, b3_ref,        # [256, 128] bf16, [1, 128] f32   (BN folded in)
    w4_ref, b4_ref,        # [128, 64]  bf16, [1, 64]  f32   (BN folded in)
    w5_ref, b5_ref,        # [64, Cpad] bf16, [1, Cpad] f32  (cols >= C: zero)
    emb_out_ref,           # [TB, 512]  f32  (first returned tensor, padded)
    out_ref,               # [TB, Cpad] f32  (second returned tensor, padded)
):
    x = x_ref[...]         # already bf16 — no cast needed

    # embedding = self.linear(flattened_embedding)   (padded 508 -> 512)
    e = (
        jnp.dot(x, w1_ref[...], preferred_element_type=jnp.float32)
        + b1_ref[...]
    )
    emb_out_ref[...] = e

    # mlp block 1: Linear(508,256) -> BatchNorm1d(256) -> Tanh  (BN folded)
    h = jnp.tanh(
        jnp.dot(e.astype(jnp.bfloat16), w2_ref[...],
                preferred_element_type=jnp.float32)
        + b2_ref[...]
    )

    # mlp block 2: Linear(256,128) -> BatchNorm1d(128) -> Tanh  (BN folded)
    h = jnp.tanh(
        jnp.dot(h.astype(jnp.bfloat16), w3_ref[...],
                preferred_element_type=jnp.float32)
        + b3_ref[...]
    )

    # mlp block 3: Linear(128,64) -> BatchNorm1d(64) -> Tanh  (BN folded)
    h = jnp.tanh(
        jnp.dot(h.astype(jnp.bfloat16), w4_ref[...],
                preferred_element_type=jnp.float32)
        + b4_ref[...]
    )

    # Dropout(0.25): identity in eval mode.
    # final Linear(64, class_num)  (padded to a lane-dense head)
    out_ref[...] = (
        jnp.dot(h.astype(jnp.bfloat16), w5_ref[...],
                preferred_element_type=jnp.float32)
        + b5_ref[...]
    )


# ---------------------------------------------------------------------------
# Parameter construction (deterministic, PyTorch-default-like init, f32)
# ---------------------------------------------------------------------------
def _linear_params(key, fan_in, fan_out):
    kw, kb = jax.random.split(key)
    bound = 1.0 / jnp.sqrt(jnp.float32(fan_in))
    # stored as [in, out] (transposed vs. torch), so the kernel does x @ W + b
    w = jax.random.uniform(kw, (fan_in, fan_out), jnp.float32, -bound, bound)
    b = jax.random.uniform(kb, (1, fan_out), jnp.float32, -bound, bound)
    return w, b


def make_params(key, emb_dim, v_size, max_length, class_num):
    """PyTorch-equivalent (unfolded, unpadded, f32) parameters."""
    keys = jax.random.split(key, 8)
    p = {}
    # nn.Embedding default init: N(0, 1)
    p["embed"] = jax.random.normal(keys[0], (v_size, emb_dim), jnp.float32)
    p["w1"], p["b1"] = _linear_params(keys[1], emb_dim * max_length, H1)
    p["w2"], p["b2"] = _linear_params(keys[2], H1, 256)
    p["w3"], p["b3"] = _linear_params(keys[3], 256, 128)
    p["w4"], p["b4"] = _linear_params(keys[4], 128, 64)
    p["w5"], p["b5"] = _linear_params(keys[5], 64, class_num)

    # BatchNorm1d (eval): gamma=1, beta=0, running_mean=0, running_var=1
    for name, dim in (("2", 256), ("3", 128), ("4", 64)):
        p["bn" + name] = {
            "gamma": jnp.ones((1, dim), jnp.float32),
            "beta": jnp.zeros((1, dim), jnp.float32),
            "mean": jnp.zeros((1, dim), jnp.float32),
            "var": jnp.ones((1, dim), jnp.float32),
        }
    return p


def pack_params(p, class_num):
    """One-time packing: fold BN into linears, pad to lane-dense dims, bf16."""

    def fold_bn(w, b, bn):
        scale = bn["gamma"] / jnp.sqrt(bn["var"] + BN_EPS)     # [1, out]
        shift = bn["beta"] - bn["mean"] * scale
        return w * scale, b * scale + shift

    # layer 1: pad output 508 -> 512 (zero-filled extra columns / bias entries)
    w1 = jnp.zeros((p["w1"].shape[0], H1_PAD), jnp.float32).at[:, :H1].set(p["w1"])
    b1 = jnp.zeros((1, H1_PAD), jnp.float32).at[:, :H1].set(p["b1"])

    # layers 2-4: fold BN, pad layer-2 input rows 508 -> 512 (zero rows)
    w2f, b2f = fold_bn(p["w2"], p["b2"], p["bn2"])
    w2 = jnp.zeros((H1_PAD, 256), jnp.float32).at[:H1, :].set(w2f)
    w3, b3 = fold_bn(p["w3"], p["b3"], p["bn3"])
    w4, b4 = fold_bn(p["w4"], p["b4"], p["bn4"])

    # classifier head: pad class_num -> multiple of 128 (zero-filled)
    c_pad = max(128, pl.cdiv(class_num, 128) * 128)
    w5 = jnp.zeros((64, c_pad), jnp.float32).at[:, :class_num].set(p["w5"])
    b5 = jnp.zeros((1, c_pad), jnp.float32).at[:, :class_num].set(p["b5"])

    # Embedding table kept in bf16 so the gathered/flattened LHS stream is bf16
    # (halves the dominant HBM input read; MXU consumes bf16 anyway).
    kp = {"embed": p["embed"].astype(jnp.bfloat16)}
    for name, (w, b) in {
        "1": (w1, b1), "2": (w2, b2f), "3": (w3, b3),
        "4": (w4, b4), "5": (w5, b5),
    }.items():
        kp["w" + name] = w.astype(jnp.bfloat16)   # halve the weight DMA
        kp["b" + name] = b.astype(jnp.float32)
    return kp


# ---------------------------------------------------------------------------
# Wrapper: embedding gather (glue) + batch-gridded fused Pallas call
# ---------------------------------------------------------------------------
@functools.partial(jax.jit, static_argnames=("class_num",))
def my_classifier_forward(kparams, sentence, class_num):
    B, L = sentence.shape
    emb_table = kparams["embed"]                     # [V, E] bf16
    E = emb_table.shape[1]
    KD = L * E

    # nn.Embedding + .view(B, -1): gather then flatten (row-major, E fastest)
    emb = jnp.take(emb_table, sentence, axis=0)      # [B, L, E] bf16
    x = emb.reshape(B, KD)                           # [B, L*E]  bf16

    c_pad = kparams["b5"].shape[1]

    # Batch tiling: multiple of 8 (sublane), capped at TILE_B; pad B up to a
    # whole number of tiles (extra rows compute garbage and are sliced off).
    tile_b = min(TILE_B, _round_up(B, 8))
    b_pad = _round_up(B, tile_b)
    if b_pad != B:
        x = jnp.pad(x, ((0, b_pad - B), (0, 0)))

    grid = (b_pad // tile_b,)

    def row_spec(cols):
        return pl.BlockSpec((tile_b, cols), lambda i: (i, 0))

    def const_spec(shape):
        # Weights/biases: whole array as one block, same block every grid step
        # -> DMA'd once, resident in VMEM across the batch loop.
        return pl.BlockSpec(shape, lambda i: (0, 0))

    kernel_args = (
        x,
        kparams["w1"], kparams["b1"],
        kparams["w2"], kparams["b2"],
        kparams["w3"], kparams["b3"],
        kparams["w4"], kparams["b4"],
        kparams["w5"], kparams["b5"],
    )

    in_specs = [
        row_spec(KD),
        const_spec((KD, H1_PAD)),  const_spec((1, H1_PAD)),
        const_spec((H1_PAD, 256)), const_spec((1, 256)),
        const_spec((256, 128)),    const_spec((1, 128)),
        const_spec((128, 64)),     const_spec((1, 64)),
        const_spec((64, c_pad)),   const_spec((1, c_pad)),
    ]
    out_specs = (row_spec(H1_PAD), row_spec(c_pad))

    # Advisory cost estimate (helps XLA schedule the surrounding glue ops).
    flops = 2 * b_pad * (KD * H1_PAD + H1_PAD * 256 + 256 * 128 + 128 * 64
                         + 64 * c_pad)
    transcendentals = b_pad * (256 + 128 + 64)
    weight_bytes = 2 * (KD * H1_PAD + H1_PAD * 256 + 256 * 128 + 128 * 64
                        + 64 * c_pad)
    bias_bytes = 4 * (H1_PAD + 256 + 128 + 64 + c_pad)
    bytes_accessed = (b_pad * KD * 2              # x (bf16)
                      + weight_bytes + bias_bytes
                      + b_pad * H1_PAD * 4        # emb_out (f32)
                      + b_pad * c_pad * 4)        # out (f32)

    emb_pad, out_pad = pl.pallas_call(
        _classifier_kernel,
        grid=grid,
        in_specs=in_specs,
        out_specs=out_specs,
        out_shape=(
            jax.ShapeDtypeStruct((b_pad, H1_PAD), jnp.float32),
            jax.ShapeDtypeStruct((b_pad, c_pad), jnp.float32),
        ),
        compiler_params=pltpu.CompilerParams(
            dimension_semantics=("parallel",),     # v7x megacore sharding
        ),
        cost_estimate=pl.CostEstimate(
            flops=flops,
            transcendentals=transcendentals,
            bytes_accessed=bytes_accessed,
        ),
    )(*kernel_args)

    # slice padded lane-dense outputs back to the module's shapes
    return emb_pad[:B, :H1], out_pad[:B, :class_num]


# ---------------------------------------------------------------------------
if __name__ == "__main__":
    # small, forward-consistent shapes
    EMB_DIM = 64
    V_SIZE = 1000
    MAX_LENGTH = 8
    CLASS_NUM = 4
    BATCH = 8

    root = jax.random.PRNGKey(0)
    k_param, k_data = jax.random.split(root)

    params = make_params(k_param, EMB_DIM, V_SIZE, MAX_LENGTH, CLASS_NUM)
    kparams = pack_params(params, CLASS_NUM)   # fold BN, pad, bf16 — done once

    sentence = jax.random.randint(
        k_data, (BATCH, MAX_LENGTH), minval=0, maxval=V_SIZE, dtype=jnp.int32
    )

    embedding, output = my_classifier_forward(kparams, sentence, class_num=CLASS_NUM)
    jax.block_until_ready((embedding, output))

    assert embedding.shape == (BATCH, H1) and embedding.dtype == jnp.float32
    assert output.shape == (BATCH, CLASS_NUM) and output.dtype == jnp.float32
    print("KERNEL_OK")
</pallas_src>

<mosaic_0001>
module attributes {stable_mosaic.version = 11 : i64} {
  func.func @_classifier_kernel(%arg0: i32, %arg1: memref<8x512xbf16, #tpu.memory_space<vmem>>, %arg2: memref<512x512xbf16, #tpu.memory_space<vmem>>, %arg3: memref<1x512xf32, #tpu.memory_space<vmem>>, %arg4: memref<512x256xbf16, #tpu.memory_space<vmem>>, %arg5: memref<1x256xf32, #tpu.memory_space<vmem>>, %arg6: memref<256x128xbf16, #tpu.memory_space<vmem>>, %arg7: memref<1x128xf32, #tpu.memory_space<vmem>>, %arg8: memref<128x64xbf16, #tpu.memory_space<vmem>>, %arg9: memref<1x64xf32, #tpu.memory_space<vmem>>, %arg10: memref<64x128xbf16, #tpu.memory_space<vmem>>, %arg11: memref<1x128xf32, #tpu.memory_space<vmem>>, %arg12: memref<8x512xf32, #tpu.memory_space<vmem>>, %arg13: memref<8x128xf32, #tpu.memory_space<vmem>>) attributes {dimension_semantics = [#tpu.dimension_semantics<parallel>], iteration_bounds = array<i64: 1>, scalar_prefetch = 0 : i64, scratch_operands = 0 : i64, tpu.core_type = #tpu.core_type<tc>, window_params = [{transform_indices = @transform_0, window_bounds = array<i64: 8, 512>}, {pipeline_mode = #tpu.pipeline_mode<synchronous>, transform_indices = @transform_1, window_bounds = array<i64: 512, 512>}, {pipeline_mode = #tpu.pipeline_mode<synchronous>, transform_indices = @transform_2, window_bounds = array<i64: 1, 512>}, {pipeline_mode = #tpu.pipeline_mode<synchronous>, transform_indices = @transform_3, window_bounds = array<i64: 512, 256>}, {pipeline_mode = #tpu.pipeline_mode<synchronous>, transform_indices = @transform_4, window_bounds = array<i64: 1, 256>}, {pipeline_mode = #tpu.pipeline_mode<synchronous>, transform_indices = @transform_5, window_bounds = array<i64: 256, 128>}, {pipeline_mode = #tpu.pipeline_mode<synchronous>, transform_indices = @transform_6, window_bounds = array<i64: 1, 128>}, {pipeline_mode = #tpu.pipeline_mode<synchronous>, transform_indices = @transform_7, window_bounds = array<i64: 128, 64>}, {pipeline_mode = #tpu.pipeline_mode<synchronous>, transform_indices = @transform_8, window_bounds = array<i64: 1, 64>}, {pipeline_mode = #tpu.pipeline_mode<synchronous>, transform_indices = @transform_9, window_bounds = array<i64: 64, 128>}, {pipeline_mode = #tpu.pipeline_mode<synchronous>, transform_indices = @transform_10, window_bounds = array<i64: 1, 128>}, {transform_indices = @transform_11, window_bounds = array<i64: 8, 512>}, {transform_indices = @transform_12, window_bounds = array<i64: 8, 128>}]} {
    %c0 = arith.constant 0 : index
    %c0_0 = arith.constant 0 : index
    %0 = vector.load %arg1[%c0, %c0_0] : memref<8x512xbf16, #tpu.memory_space<vmem>>, vector<8x512xbf16>
    %c0_1 = arith.constant 0 : index
    %c0_2 = arith.constant 0 : index
    %1 = vector.load %arg2[%c0_1, %c0_2] : memref<512x512xbf16, #tpu.memory_space<vmem>>, vector<512x512xbf16>
    %cst = arith.constant dense<0.000000e+00> : vector<8x512xf32>
    %2 = tpu.matmul %0, %1, %cst {dimension_numbers = #tpu.dot_dimension_numbers<[1], [0], [0], [1], [0, 0, 1, 1], [], []>} : vector<8x512xbf16>, vector<512x512xbf16>, vector<8x512xf32> -> vector<8x512xf32>
    %c0_3 = arith.constant 0 : index
    %c0_4 = arith.constant 0 : index
    %3 = vector.load %arg3[%c0_3, %c0_4] : memref<1x512xf32, #tpu.memory_space<vmem>>, vector<1x512xf32>
    %4 = vector.broadcast %3 : vector<1x512xf32> to vector<8x512xf32>
    %5 = arith.addf %2, %4 : vector<8x512xf32>
    %c0_5 = arith.constant 0 : index
    %c0_6 = arith.constant 0 : index
    %6 = vector.load %arg12[%c0_5, %c0_6] : memref<8x512xf32, #tpu.memory_space<vmem>>, vector<8x512xf32>
    tpu.vector_store %arg12[%c0_5, %c0_6], %5 {strides = array<i32>} : memref<8x512xf32, #tpu.memory_space<vmem>>, vector<8x512xf32>,
    %7 = arith.truncf %5 : vector<8x512xf32> to vector<8x512xbf16>
    %c0_7 = arith.constant 0 : index
    %c0_8 = arith.constant 0 : index
    %8 = vector.load %arg4[%c0_7, %c0_8] : memref<512x256xbf16, #tpu.memory_space<vmem>>, vector<512x256xbf16>
    %cst_9 = arith.constant dense<0.000000e+00> : vector<8x256xf32>
    %9 = tpu.matmul %7, %8, %cst_9 {dimension_numbers = #tpu.dot_dimension_numbers<[1], [0], [0], [1], [0, 0, 1, 1], [], []>} : vector<8x512xbf16>, vector<512x256xbf16>, vector<8x256xf32> -> vector<8x256xf32>
    %c0_10 = arith.constant 0 : index
    %c0_11 = arith.constant 0 : index
    %10 = vector.load %arg5[%c0_10, %c0_11] : memref<1x256xf32, #tpu.memory_space<vmem>>, vector<1x256xf32>
    %11 = vector.broadcast %10 : vector<1x256xf32> to vector<8x256xf32>
    %12 = arith.addf %9, %11 : vector<8x256xf32>
    %13 = math.tanh %12 : vector<8x256xf32>
    %14 = arith.truncf %13 : vector<8x256xf32> to vector<8x256xbf16>
    %c0_12 = arith.constant 0 : index
    %c0_13 = arith.constant 0 : index
    %15 = vector.load %arg6[%c0_12, %c0_13] : memref<256x128xbf16, #tpu.memory_space<vmem>>, vector<256x128xbf16>
    %cst_14 = arith.constant dense<0.000000e+00> : vector<8x128xf32>
    %16 = tpu.matmul %14, %15, %cst_14 {dimension_numbers = #tpu.dot_dimension_numbers<[1], [0], [0], [1], [0, 0, 1, 1], [], []>} : vector<8x256xbf16>, vector<256x128xbf16>, vector<8x128xf32> -> vector<8x128xf32>
    %c0_15 = arith.constant 0 : index
    %c0_16 = arith.constant 0 : index
    %17 = vector.load %arg7[%c0_15, %c0_16] : memref<1x128xf32, #tpu.memory_space<vmem>>, vector<1x128xf32>
    %18 = vector.broadcast %17 : vector<1x128xf32> to vector<8x128xf32>
    %19 = arith.addf %16, %18 : vector<8x128xf32>
    %20 = math.tanh %19 : vector<8x128xf32>
    %21 = arith.truncf %20 : vector<8x128xf32> to vector<8x128xbf16>
    %c0_17 = arith.constant 0 : index
    %c0_18 = arith.constant 0 : index
    %22 = vector.load %arg8[%c0_17, %c0_18] : memref<128x64xbf16, #tpu.memory_space<vmem>>, vector<128x64xbf16>
    %cst_19 = arith.constant dense<0.000000e+00> : vector<8x64xf32>
    %23 = tpu.matmul %21, %22, %cst_19 {dimension_numbers = #tpu.dot_dimension_numbers<[1], [0], [0], [1], [0, 0, 1, 1], [], []>} : vector<8x128xbf16>, vector<128x64xbf16>, vector<8x64xf32> -> vector<8x64xf32>
    %c0_20 = arith.constant 0 : index
    %c0_21 = arith.constant 0 : index
    %24 = vector.load %arg9[%c0_20, %c0_21] : memref<1x64xf32, #tpu.memory_space<vmem>>, vector<1x64xf32>
    %25 = vector.broadcast %24 : vector<1x64xf32> to vector<8x64xf32>
    %26 = arith.addf %23, %25 : vector<8x64xf32>
    %27 = math.tanh %26 : vector<8x64xf32>
    %28 = arith.truncf %27 : vector<8x64xf32> to vector<8x64xbf16>
    %c0_22 = arith.constant 0 : index
    %c0_23 = arith.constant 0 : index
    %29 = vector.load %arg10[%c0_22, %c0_23] : memref<64x128xbf16, #tpu.memory_space<vmem>>, vector<64x128xbf16>
    %cst_24 = arith.constant dense<0.000000e+00> : vector<8x128xf32>
    %30 = tpu.matmul %28, %29, %cst_24 {dimension_numbers = #tpu.dot_dimension_numbers<[1], [0], [0], [1], [0, 0, 1, 1], [], []>} : vector<8x64xbf16>, vector<64x128xbf16>, vector<8x128xf32> -> vector<8x128xf32>
    %c0_25 = arith.constant 0 : index
    %c0_26 = arith.constant 0 : index
    %31 = vector.load %arg11[%c0_25, %c0_26] : memref<1x128xf32, #tpu.memory_space<vmem>>, vector<1x128xf32>
    %32 = vector.broadcast %31 : vector<1x128xf32> to vector<8x128xf32>
    %33 = arith.addf %30, %32 : vector<8x128xf32>
    %c0_27 = arith.constant 0 : index
    %c0_28 = arith.constant 0 : index
    %34 = vector.load %arg13[%c0_27, %c0_28] : memref<8x128xf32, #tpu.memory_space<vmem>>, vector<8x128xf32>
    tpu.vector_store %arg13[%c0_27, %c0_28], %33 {strides = array<i32>} : memref<8x128xf32, #tpu.memory_space<vmem>>, vector<8x128xf32>,
    return
  }
  func.func @transform_0(%arg0: i32) -> (i32, i32) {
    %c0_i32 = arith.constant 0 : i32
    %c0_i32_0 = arith.constant 0 : i32
    return %arg0, %c0_i32 : i32, i32
  }
  func.func @transform_1(%arg0: i32) -> (i32, i32) {
    %c0_i32 = arith.constant 0 : i32
    %c0_i32_0 = arith.constant 0 : i32
    %c0_i32_1 = arith.constant 0 : i32
    return %c0_i32, %c0_i32_0 : i32, i32
  }
  func.func @transform_2(%arg0: i32) -> (i32, i32) {
    %c0_i32 = arith.constant 0 : i32
    %c0_i32_0 = arith.constant 0 : i32
    %c0_i32_1 = arith.constant 0 : i32
    return %c0_i32, %c0_i32_0 : i32, i32
  }
  func.func @transform_3(%arg0: i32) -> (i32, i32) {
    %c0_i32 = arith.constant 0 : i32
    %c0_i32_0 = arith.constant 0 : i32
    %c0_i32_1 = arith.constant 0 : i32
    return %c0_i32, %c0_i32_0 : i32, i32
  }
  func.func @transform_4(%arg0: i32) -> (i32, i32) {
    %c0_i32 = arith.constant 0 : i32
    %c0_i32_0 = arith.constant 0 : i32
    %c0_i32_1 = arith.constant 0 : i32
    return %c0_i32, %c0_i32_0 : i32, i32
  }
  func.func @transform_5(%arg0: i32) -> (i32, i32) {
    %c0_i32 = arith.constant 0 : i32
    %c0_i32_0 = arith.constant 0 : i32
    %c0_i32_1 = arith.constant 0 : i32
    return %c0_i32, %c0_i32_0 : i32, i32
  }
  func.func @transform_6(%arg0: i32) -> (i32, i32) {
    %c0_i32 = arith.constant 0 : i32
    %c0_i32_0 = arith.constant 0 : i32
    %c0_i32_1 = arith.constant 0 : i32
    return %c0_i32, %c0_i32_0 : i32, i32
  }
  func.func @transform_7(%arg0: i32) -> (i32, i32) {
    %c0_i32 = arith.constant 0 : i32
    %c0_i32_0 = arith.constant 0 : i32
    %c0_i32_1 = arith.constant 0 : i32
    return %c0_i32, %c0_i32_0 : i32, i32
  }
  func.func @transform_8(%arg0: i32) -> (i32, i32) {
    %c0_i32 = arith.constant 0 : i32
    %c0_i32_0 = arith.constant 0 : i32
    %c0_i32_1 = arith.constant 0 : i32
    return %c0_i32, %c0_i32_0 : i32, i32
  }
  func.func @transform_9(%arg0: i32) -> (i32, i32) {
    %c0_i32 = arith.constant 0 : i32
    %c0_i32_0 = arith.constant 0 : i32
    %c0_i32_1 = arith.constant 0 : i32
    return %c0_i32, %c0_i32_0 : i32, i32
  }
  func.func @transform_10(%arg0: i32) -> (i32, i32) {
    %c0_i32 = arith.constant 0 : i32
    %c0_i32_0 = arith.constant 0 : i32
    %c0_i32_1 = arith.constant 0 : i32
    return %c0_i32, %c0_i32_0 : i32, i32
  }
  func.func @transform_11(%arg0: i32) -> (i32, i32) {
    %c0_i32 = arith.constant 0 : i32
    %c0_i32_0 = arith.constant 0 : i32
    return %arg0, %c0_i32 : i32, i32
  }
  func.func @transform_12(%arg0: i32) -> (i32, i32) {
    %c0_i32 = arith.constant 0 : i32
    %c0_i32_0 = arith.constant 0 : i32
    return %arg0, %c0_i32 : i32, i32
  }
}

</mosaic_0001>

<llo_original>
// kernel: my_classifier_forward.1
$region0: #{my_classifier_forward.1}
  #allocation0 [shape = 'u32[]', space=smem, size = 0x4, offset = 0x4, fixed_abs, tag = 'smem constant byte address 0x4 - core index']
  #allocation1 [shape = 'u32[72,128]{1,0:T(1,128)}', space=vmem, size = 0x9000, scoped, tag = 'internal scratch']
  %s0 = inlined_call_operand.vmem [shape: bf16[8,512], index: 0, kind: input, shape index: {}]
  %s1 = inlined_call_operand.vmem [shape: bf16[512,512], index: 1, kind: input, shape index: {}]
  %s2 = inlined_call_operand.vmem [shape: f32[1,512], index: 2, kind: input, shape index: {}]
  %s3 = inlined_call_operand.hbm [shape: bf16[512,256], index: 3, kind: input, shape index: {}]
  %s4 = inlined_call_operand.vmem [shape: f32[1,256], index: 4, kind: input, shape index: {}]
  %s5 = inlined_call_operand.vmem [shape: bf16[256,128], index: 5, kind: input, shape index: {}]
  %s6 = inlined_call_operand.vmem [shape: f32[1,128], index: 6, kind: input, shape index: {}]
  %s7 = inlined_call_operand.vmem [shape: bf16[128,64], index: 7, kind: input, shape index: {}]
  %s8 = inlined_call_operand.vmem [shape: f32[1,64], index: 8, kind: input, shape index: {}]
  %s9 = inlined_call_operand.vmem [shape: bf16[64,128], index: 9, kind: input, shape index: {}]
  %s10 = inlined_call_operand.vmem [shape: f32[1,128], index: 10, kind: input, shape index: {}]
  %s11 = inlined_call_operand.hbm [shape: f32[8,512], index: 11, kind: output, shape index: {0}]
  %s12 = inlined_call_operand.vmem [shape: f32[8,128], index: 12, kind: output, shape index: {1}]
  %13 = xla_tuple %s11, %s12
  %s14 = sld [smem:[#allocation0]]
  $region66: #{my_classifier_forward.1} parent=0
    _
  %s16 = ssub.s32 1, %s14
  %s17 = scalar_select 0, %s16, %s14
  $region1: #{my_classifier_forward.1} parent=0
    #allocation2 [shape = 'u8[262144]{0}', space=vmem, size = 0x40000, scoped, tag = 'input window, operand 3, single buffered']
    #allocation3 [shape = 's32[1]{0}', space=sflag, size = 0x4, scoped, tag = 'scoped memory for my_classifier_forward.1']
    #allocation4 [shape = 's32[1]{0}', space=sflag, size = 0x4, scoped, tag = 'scoped memory for my_classifier_forward.1']
    #allocation5 [shape = 'u8[16384]{0}', space=vmem, size = 0x4000, scoped, tag = 'output window, operand 0, single buffered']
    %18 = vsyncpa [#allocation3], 0
    %19 = vsyncpa [#allocation4], 0
    // Predicated region
    $region2: #{my_classifier_forward.1} parent=1 // pred_check
      _
    $region3: #{my_classifier_forward.1} parent=1 // pred_check_branch
      %21 = sbr.rel (0) target = $region5
    $region4: #{my_classifier_forward.1} parent=1 // pred_region
      _
    $region5: #{my_classifier_forward.1} parent=1 // pred_fallthru
      _
    // Predicated region
    $region6: #{my_classifier_forward.1} parent=1 // pred_check
      _
    $region7: #{my_classifier_forward.1} parent=1 // pred_check_branch
      %23 = sbr.rel (0) target = $region9
    $region8: #{my_classifier_forward.1} parent=1 // pred_region
      _
    $region9: #{my_classifier_forward.1} parent=1 // pred_fallthru
      _
    // Predicated region
    $region10: #{my_classifier_forward.1} parent=1 // pred_check
      _
    $region11: #{my_classifier_forward.1} parent=1 // pred_check_branch
      %25 = sbr.rel (0) target = $region13
    $region12: #{my_classifier_forward.1} parent=1 // pred_region
      _
    $region13: #{my_classifier_forward.1} parent=1 // pred_fallthru
      _
    // Predicated region
    $region14: #{my_classifier_forward.1} parent=1 // pred_check
      _
    $region15: #{my_classifier_forward.1} parent=1 // pred_check_branch
      %27 = sbr.rel (0) target = $region17
    $region16: #{my_classifier_forward.1} parent=1 // pred_region
      %29 = vsyncadd [#allocation3], 0
      %s30 = sshll.u32 %s3, 4
      %s31 = int_to_ptr.hbm [resolvable:$true] %s30
      %s32 = sshll.u32 [#allocation2], 4
      %s33 = int_to_ptr.vmem [resolvable:$true] %s32
      %38 = dma.hbm_to_vmem [thread:$0]  %s31, 8192, %s33, [#allocation3], 128, 128, 8
    $region17: #{my_classifier_forward.1} parent=1 // pred_fallthru
      _
    // Predicated region
    $region18: #{my_classifier_forward.1} parent=1 // pred_check
      _
    $region19: #{my_classifier_forward.1} parent=1 // pred_check_branch
      %40 = sbr.rel (0) target = $region21
    $region20: #{my_classifier_forward.1} parent=1 // pred_region
      _
    $region21: #{my_classifier_forward.1} parent=1 // pred_fallthru
      _
    // Predicated region
    $region22: #{my_classifier_forward.1} parent=1 // pred_check
      _
    $region23: #{my_classifier_forward.1} parent=1 // pred_check_branch
      %42 = sbr.rel (0) target = $region25
    $region24: #{my_classifier_forward.1} parent=1 // pred_region
      _
    $region25: #{my_classifier_forward.1} parent=1 // pred_fallthru
      _
    // Predicated region
    $region26: #{my_classifier_forward.1} parent=1 // pred_check
      _
    $region27: #{my_classifier_forward.1} parent=1 // pred_check_branch
      %44 = sbr.rel (0) target = $region29
    $region28: #{my_classifier_forward.1} parent=1 // pred_region
      _
    $region29: #{my_classifier_forward.1} parent=1 // pred_fallthru
      _
    // Predicated region
    $region30: #{my_classifier_forward.1} parent=1 // pred_check
      _
    $region31: #{my_classifier_forward.1} parent=1 // pred_check_branch
      %46 = sbr.rel (0) target = $region33
    $region32: #{my_classifier_forward.1} parent=1 // pred_region
      _
    $region33: #{my_classifier_forward.1} parent=1 // pred_fallthru
      _
    // Predicated region
    $region34: #{my_classifier_forward.1} parent=1 // pred_check
      _
    $region35: #{my_classifier_forward.1} parent=1 // pred_check_branch
      %48 = sbr.rel (0) target = $region37
    $region36: #{my_classifier_forward.1} parent=1 // pred_region
      _
    $region37: #{my_classifier_forward.1} parent=1 // pred_fallthru
      _
    // Predicated region
    $region38: #{my_classifier_forward.1} parent=1 // pred_check
      _
    $region39: #{my_classifier_forward.1} parent=1 // pred_check_branch
      %50 = sbr.rel (0) target = $region41
    $region40: #{my_classifier_forward.1} parent=1 // pred_region
      _
    $region41: #{my_classifier_forward.1} parent=1 // pred_fallthru
      _
    // Predicated region
    $region42: #{my_classifier_forward.1} parent=1 // pred_check
      _
    $region43: #{my_classifier_forward.1} parent=1 // pred_check_branch
      %52 = sbr.rel (0) target = $region45
    $region44: #{my_classifier_forward.1} parent=1 // pred_region
      _
    $region45: #{my_classifier_forward.1} parent=1 // pred_fallthru
      _
    // Predicated region
    $region46: #{my_classifier_forward.1} parent=1 // pred_check
      _
    $region47: #{my_classifier_forward.1} parent=1 // pred_check_branch
      %54 = sbr.rel (0) target = $region49
    $region48: #{my_classifier_forward.1} parent=1 // pred_region
      %56 = dma.done [#allocation3], 8192
    $region49: #{my_classifier_forward.1} parent=1 // pred_fallthru
      _
    %v58 = vld [vmem:[%s0] sm:$0xff]
    %v59 = vld [vmem:[%s0 + $0x8] sm:$0xff]
    %v60 = vld [vmem:[%s1] sm:$0xff]
    %v61 = vld [vmem:[%s1 + $0x8] sm:$0xff]
    %v62 = vld [vmem:[%s1 + $0x10] sm:$0xff]
    %v63 = vld [vmem:[%s1 + $0x18] sm:$0xff]
    %v64 = vld [vmem:[%s1 + $0x20] sm:$0xff]
    %v65 = vld [vmem:[%s1 + $0x28] sm:$0xff]
    %v66 = vld [vmem:[%s1 + $0x30] sm:$0xff]
    %v67 = vld [vmem:[%s1 + $0x38] sm:$0xff]
    %v68 = vld [vmem:[%s1 + $0x40] sm:$0xff]
    %v69 = vld [vmem:[%s1 + $0x48] sm:$0xff]
    %v70 = vld [vmem:[%s1 + $0x50] sm:$0xff]
    %v71 = vld [vmem:[%s1 + $0x58] sm:$0xff]
    %v72 = vld [vmem:[%s1 + $0x60] sm:$0xff]
    %v73 = vld [vmem:[%s1 + $0x68] sm:$0xff]
    %v74 = vld [vmem:[%s1 + $0x70] sm:$0xff]
    %v75 = vld [vmem:[%s1 + $0x78] sm:$0xff]
    %v76 = vld [vmem:[%s1 + $0x80] sm:$0xff]
    %v77 = vld [vmem:[%s1 + $0x88] sm:$0xff]
    %v78 = vld [vmem:[%s1 + $0x90] sm:$0xff]
    %v79 = vld [vmem:[%s1 + $0x98] sm:$0xff]
    %v80 = vld [vmem:[%s1 + $0xa0] sm:$0xff]
    %v81 = vld [vmem:[%s1 + $0xa8] sm:$0xff]
    %v82 = vld [vmem:[%s1 + $0xb0] sm:$0xff]
    %v83 = vld [vmem:[%s1 + $0xb8] sm:$0xff]
    %v84 = vld [vmem:[%s1 + $0xc0] sm:$0xff]
    %v85 = vld [vmem:[%s1 + $0xc8] sm:$0xff]
    %v86 = vld [vmem:[%s1 + $0xd0] sm:$0xff]
    %v87 = vld [vmem:[%s1 + $0xd8] sm:$0xff]
    %v88 = vld [vmem:[%s1 + $0xe0] sm:$0xff]
    %v89 = vld [vmem:[%s1 + $0xe8] sm:$0xff]
    %v90 = vld [vmem:[%s1 + $0xf0] sm:$0xff]
    %v91 = vld [vmem:[%s1 + $0xf8] sm:$0xff]
    %v92 = vld [vmem:[%s1 + $0x100] sm:$0xff]
    %v93 = vld [vmem:[%s1 + $0x108] sm:$0xff]
    %v94 = vld [vmem:[%s1 + $0x110] sm:$0xff]
    %v95 = vld [vmem:[%s1 + $0x118] sm:$0xff]
    %v96 = vld [vmem:[%s1 + $0x120] sm:$0xff]
    %v97 = vld [vmem:[%s1 + $0x128] sm:$0xff]
    %v98 = vld [vmem:[%s1 + $0x130] sm:$0xff]
    %v99 = vld [vmem:[%s1 + $0x138] sm:$0xff]
    %v100 = vld [vmem:[%s1 + $0x140] sm:$0xff]
    %v101 = vld [vmem:[%s1 + $0x148] sm:$0xff]
    %v102 = vld [vmem:[%s1 + $0x150] sm:$0xff]
    %v103 = vld [vmem:[%s1 + $0x158] sm:$0xff]
    %v104 = vld [vmem:[%s1 + $0x160] sm:$0xff]
    %v105 = vld [vmem:[%s1 + $0x168] sm:$0xff]
    %v106 = vld [vmem:[%s1 + $0x170] sm:$0xff]
    %v107 = vld [vmem:[%s1 + $0x178] sm:$0xff]
    %v108 = vld [vmem:[%s1 + $0x180] sm:$0xff]
    %v109 = vld [vmem:[%s1 + $0x188] sm:$0xff]
    %v110 = vld [vmem:[%s1 + $0x190] sm:$0xff]
    %v111 = vld [vmem:[%s1 + $0x198] sm:$0xff]
    %v112 = vld [vmem:[%s1 + $0x1a0] sm:$0xff]
    %v113 = vld [vmem:[%s1 + $0x1a8] sm:$0xff]
    %v114 = vld [vmem:[%s1 + $0x1b0] sm:$0xff]
    %v115 = vld [vmem:[%s1 + $0x1b8] sm:$0xff]
    %v116 = vld [vmem:[%s1 + $0x1c0] sm:$0xff]
    %v117 = vld [vmem:[%s1 + $0x1c8] sm:$0xff]
    %v118 = vld [vmem:[%s1 + $0x1d0] sm:$0xff]
    %v119 = vld [vmem:[%s1 + $0x1d8] sm:$0xff]
    %v120 = vld [vmem:[%s1 + $0x1e0] sm:$0xff]
    %v121 = vld [vmem:[%s1 + $0x1e8] sm:$0xff]
    %v122 = vld [vmem:[%s1 + $0x1f0] sm:$0xff]
    %v123 = vld [vmem:[%s1 + $0x1f8] sm:$0xff]
    %v124 = vld [vmem:[%s1 + $0x200] sm:$0xff]
    %v125 = vld [vmem:[%s1 + $0x208] sm:$0xff]
    %v126 = vld [vmem:[%s1 + $0x210] sm:$0xff]
    %v127 = vld [vmem:[%s1 + $0x218] sm:$0xff]
    %v128 = vld [vmem:[%s1 + $0x220] sm:$0xff]
    %v129 = vld [vmem:[%s1 + $0x228] sm:$0xff]
    %v130 = vld [vmem:[%s1 + $0x230] sm:$0xff]
    %v131 = vld [vmem:[%s1 + $0x238] sm:$0xff]
    %v132 = vld [vmem:[%s1 + $0x240] sm:$0xff]
    %v133 = vld [vmem:[%s1 + $0x248] sm:$0xff]
    %v134 = vld [vmem:[%s1 + $0x250] sm:$0xff]
    %v135 = vld [vmem:[%s1 + $0x258] sm:$0xff]
    %v136 = vld [vmem:[%s1 + $0x260] sm:$0xff]
    %v137 = vld [vmem:[%s1 + $0x268] sm:$0xff]
    %v138 = vld [vmem:[%s1 + $0x270] sm:$0xff]
    %v139 = vld [vmem:[%s1 + $0x278] sm:$0xff]
    %v140 = vld [vmem:[%s1 + $0x280] sm:$0xff]
    %v141 = vld [vmem:[%s1 + $0x288] sm:$0xff]
    %v142 = vld [vmem:[%s1 + $0x290] sm:$0xff]
    %v143 = vld [vmem:[%s1 + $0x298] sm:$0xff]
    %v144 = vld [vmem:[%s1 + $0x2a0] sm:$0xff]
    %v145 = vld [vmem:[%s1 + $0x2a8] sm:$0xff]
    %v146 = vld [vmem:[%s1 + $0x2b0] sm:$0xff]
    %v147 = vld [vmem:[%s1 + $0x2b8] sm:$0xff]
    %v148 = vld [vmem:[%s1 + $0x2c0] sm:$0xff]
    %v149 = vld [vmem:[%s1 + $0x2c8] sm:$0xff]
    %v150 = vld [vmem:[%s1 + $0x2d0] sm:$0xff]
    %v151 = vld [vmem:[%s1 + $0x2d8] sm:$0xff]
    %v152 = vld [vmem:[%s1 + $0x2e0] sm:$0xff]
    %v153 = vld [vmem:[%s1 + $0x2e8] sm:$0xff]
    %v154 = vld [vmem:[%s1 + $0x2f0] sm:$0xff]
    %v155 = vld [vmem:[%s1 + $0x2f8] sm:$0xff]
    %v156 = vld [vmem:[%s1 + $0x300] sm:$0xff]
    %v157 = vld [vmem:[%s1 + $0x308] sm:$0xff]
    %v158 = vld [vmem:[%s1 + $0x310] sm:$0xff]
    %v159 = vld [vmem:[%s1 + $0x318] sm:$0xff]
    %v160 = vld [vmem:[%s1 + $0x320] sm:$0xff]
    %v161 = vld [vmem:[%s1 + $0x328] sm:$0xff]
    %v162 = vld [vmem:[%s1 + $0x330] sm:$0xff]
    %v163 = vld [vmem:[%s1 + $0x338] sm:$0xff]
    %v164 = vld [vmem:[%s1 + $0x340] sm:$0xff]
    %v165 = vld [vmem:[%s1 + $0x348] sm:$0xff]
    %v166 = vld [vmem:[%s1 + $0x350] sm:$0xff]
    %v167 = vld [vmem:[%s1 + $0x358] sm:$0xff]
    %v168 = vld [vmem:[%s1 + $0x360] sm:$0xff]
    %v169 = vld [vmem:[%s1 + $0x368] sm:$0xff]
    %v170 = vld [vmem:[%s1 + $0x370] sm:$0xff]
    %v171 = vld [vmem:[%s1 + $0x378] sm:$0xff]
    %v172 = vld [vmem:[%s1 + $0x380] sm:$0xff]
    %v173 = vld [vmem:[%s1 + $0x388] sm:$0xff]
    %v174 = vld [vmem:[%s1 + $0x390] sm:$0xff]
    %v175 = vld [vmem:[%s1 + $0x398] sm:$0xff]
    %v176 = vld [vmem:[%s1 + $0x3a0] sm:$0xff]
    %v177 = vld [vmem:[%s1 + $0x3a8] sm:$0xff]
    %v178 = vld [vmem:[%s1 + $0x3b0] sm:$0xff]
    %v179 = vld [vmem:[%s1 + $0x3b8] sm:$0xff]
    %v180 = vld [vmem:[%s1 + $0x3c0] sm:$0xff]
    %v181 = vld [vmem:[%s1 + $0x3c8] sm:$0xff]
    %v182 = vld [vmem:[%s1 + $0x3d0] sm:$0xff]
    %v183 = vld [vmem:[%s1 + $0x3d8] sm:$0xff]
    %v184 = vld [vmem:[%s1 + $0x3e0] sm:$0xff]
    %v185 = vld [vmem:[%s1 + $0x3e8] sm:$0xff]
    %v186 = vld [vmem:[%s1 + $0x3f0] sm:$0xff]
    %v187 = vld [vmem:[%s1 + $0x3f8] sm:$0xff]
    %v188 = vld [vmem:[%s2] sm:$0xf]
    %v190 = vperm.slane %v188, 0
    %v191 = vperm.slane %v188, 1
    %v192 = vperm.slane %v188, 2
    %v193 = vperm.slane %v188, 3
    %v200 = vunpack.c.l.b16 %v58
    %v201 = vunpack.c.h.b16 %v58
    %v202 = vunpack.c.l.b16 %v59
    %v203 = vunpack.c.h.b16 %v59
    %v204 = vpack.c.b16 %v200, %v200
    %v205 = vpack.c.b16 %v201, %v201
    %v206 = vpack.c.b16 %v202, %v202
    %v207 = vpack.c.b16 %v203, %v203
    %v340 = vunpack.c.l.b16 %v60
    %v341 = vunpack.c.h.b16 %v60
    %v342 = vunpack.c.l.b16 %v61
    %v343 = vunpack.c.h.b16 %v61
    %v344 = vunpack.c.l.b16 %v62
    %v345 = vunpack.c.h.b16 %v62
    %v346 = vunpack.c.l.b16 %v63
    %v347 = vunpack.c.h.b16 %v63
    %v348 = vunpack.c.l.b16 %v64
    %v349 = vunpack.c.h.b16 %v64
    %v350 = vunpack.c.l.b16 %v65
    %v351 = vunpack.c.h.b16 %v65
    %v352 = vunpack.c.l.b16 %v66
    %v353 = vunpack.c.h.b16 %v66
    %v354 = vunpack.c.l.b16 %v67
    %v355 = vunpack.c.h.b16 %v67
    %v356 = vunpack.c.l.b16 %v68
    %v357 = vunpack.c.h.b16 %v68
    %v358 = vunpack.c.l.b16 %v69
    %v359 = vunpack.c.h.b16 %v69
    %v360 = vunpack.c.l.b16 %v70
    %v361 = vunpack.c.h.b16 %v70
    %v362 = vunpack.c.l.b16 %v71
    %v363 = vunpack.c.h.b16 %v71
    %v364 = vunpack.c.l.b16 %v72
    %v365 = vunpack.c.h.b16 %v72
    %v366 = vunpack.c.l.b16 %v73
    %v367 = vunpack.c.h.b16 %v73
    %v368 = vunpack.c.l.b16 %v74
    %v369 = vunpack.c.h.b16 %v74
    %v370 = vunpack.c.l.b16 %v75
    %v371 = vunpack.c.h.b16 %v75
    %v372 = vunpack.c.l.b16 %v76
    %v373 = vunpack.c.h.b16 %v76
    %v374 = vunpack.c.l.b16 %v77
    %v375 = vunpack.c.h.b16 %v77
    %v376 = vunpack.c.l.b16 %v78
    %v377 = vunpack.c.h.b16 %v78
    %v378 = vunpack.c.l.b16 %v79
    %v379 = vunpack.c.h.b16 %v79
    %v380 = vunpack.c.l.b16 %v80
    %v381 = vunpack.c.h.b16 %v80
    %v382 = vunpack.c.l.b16 %v81
    %v383 = vunpack.c.h.b16 %v81
    %v384 = vunpack.c.l.b16 %v82
    %v385 = vunpack.c.h.b16 %v82
    %v386 = vunpack.c.l.b16 %v83
    %v387 = vunpack.c.h.b16 %v83
    %v388 = vunpack.c.l.b16 %v84
    %v389 = vunpack.c.h.b16 %v84
    %v390 = vunpack.c.l.b16 %v85
    %v391 = vunpack.c.h.b16 %v85
    %v392 = vunpack.c.l.b16 %v86
    %v393 = vunpack.c.h.b16 %v86
    %v394 = vunpack.c.l.b16 %v87
    %v395 = vunpack.c.h.b16 %v87
    %v396 = vunpack.c.l.b16 %v88
    %v397 = vunpack.c.h.b16 %v88
    %v398 = vunpack.c.l.b16 %v89
    %v399 = vunpack.c.h.b16 %v89
    %v400 = vunpack.c.l.b16 %v90
    %v401 = vunpack.c.h.b16 %v90
    %v402 = vunpack.c.l.b16 %v91
    %v403 = vunpack.c.h.b16 %v91
    %v404 = vunpack.c.l.b16 %v92
    %v405 = vunpack.c.h.b16 %v92
    %v406 = vunpack.c.l.b16 %v93
    %v407 = vunpack.c.h.b16 %v93
    %v408 = vunpack.c.l.b16 %v94
    %v409 = vunpack.c.h.b16 %v94
    %v410 = vunpack.c.l.b16 %v95
    %v411 = vunpack.c.h.b16 %v95
    %v412 = vunpack.c.l.b16 %v96
    %v413 = vunpack.c.h.b16 %v96
    %v414 = vunpack.c.l.b16 %v97
    %v415 = vunpack.c.h.b16 %v97
    %v416 = vunpack.c.l.b16 %v98
    %v417 = vunpack.c.h.b16 %v98
    %v418 = vunpack.c.l.b16 %v99
    %v419 = vunpack.c.h.b16 %v99
    %v420 = vunpack.c.l.b16 %v100
    %v421 = vunpack.c.h.b16 %v100
    %v422 = vunpack.c.l.b16 %v101
    %v423 = vunpack.c.h.b16 %v101
    %v424 = vunpack.c.l.b16 %v102
    %v425 = vunpack.c.h.b16 %v102
    %v426 = vunpack.c.l.b16 %v103
    %v427 = vunpack.c.h.b16 %v103
    %v428 = vunpack.c.l.b16 %v104
    %v429 = vunpack.c.h.b16 %v104
    %v430 = vunpack.c.l.b16 %v105
    %v431 = vunpack.c.h.b16 %v105
    %v432 = vunpack.c.l.b16 %v106
    %v433 = vunpack.c.h.b16 %v106
    %v434 = vunpack.c.l.b16 %v107
    %v435 = vunpack.c.h.b16 %v107
    %v436 = vunpack.c.l.b16 %v108
    %v437 = vunpack.c.h.b16 %v108
    %v438 = vunpack.c.l.b16 %v109
    %v439 = vunpack.c.h.b16 %v109
    %v440 = vunpack.c.l.b16 %v110
    %v441 = vunpack.c.h.b16 %v110
    %v442 = vunpack.c.l.b16 %v111
    %v443 = vunpack.c.h.b16 %v111
    %v444 = vunpack.c.l.b16 %v112
    %v445 = vunpack.c.h.b16 %v112
    %v446 = vunpack.c.l.b16 %v113
    %v447 = vunpack.c.h.b16 %v113
    %v448 = vunpack.c.l.b16 %v114
    %v449 = vunpack.c.h.b16 %v114
    %v450 = vunpack.c.l.b16 %v115
    %v451 = vunpack.c.h.b16 %v115
    %v452 = vunpack.c.l.b16 %v116
    %v453 = vunpack.c.h.b16 %v116
    %v454 = vunpack.c.l.b16 %v117
    %v455 = vunpack.c.h.b16 %v117
    %v456 = vunpack.c.l.b16 %v118
    %v457 = vunpack.c.h.b16 %v118
    %v458 = vunpack.c.l.b16 %v119
    %v459 = vunpack.c.h.b16 %v119
    %v460 = vunpack.c.l.b16 %v120
    %v461 = vunpack.c.h.b16 %v120
    %v462 = vunpack.c.l.b16 %v121
    %v463 = vunpack.c.h.b16 %v121
    %v464 = vunpack.c.l.b16 %v122
    %v465 = vunpack.c.h.b16 %v122
    %v466 = vunpack.c.l.b16 %v123
    %v467 = vunpack.c.h.b16 %v123
    %v468 = vunpack.c.l.b16 %v124
    %v469 = vunpack.c.h.b16 %v124
    %v470 = vunpack.c.l.b16 %v125
    %v471 = vunpack.c.h.b16 %v125
    %v472 = vunpack.c.l.b16 %v126
    %v473 = vunpack.c.h.b16 %v126
    %v474 = vunpack.c.l.b16 %v127
    %v475 = vunpack.c.h.b16 %v127
    %v476 = vunpack.c.l.b16 %v128
    %v477 = vunpack.c.h.b16 %v128
    %v478 = vunpack.c.l.b16 %v129
    %v479 = vunpack.c.h.b16 %v129
    %v480 = vunpack.c.l.b16 %v130
    %v481 = vunpack.c.h.b16 %v130
    %v482 = vunpack.c.l.b16 %v131
    %v483 = vunpack.c.h.b16 %v131
    %v484 = vunpack.c.l.b16 %v132
    %v485 = vunpack.c.h.b16 %v132
    %v486 = vunpack.c.l.b16 %v133
    %v487 = vunpack.c.h.b16 %v133
    %v488 = vunpack.c.l.b16 %v134
    %v489 = vunpack.c.h.b16 %v134
    %v490 = vunpack.c.l.b16 %v135
    %v491 = vunpack.c.h.b16 %v135
    %v492 = vunpack.c.l.b16 %v136
    %v493 = vunpack.c.h.b16 %v136
    %v494 = vunpack.c.l.b16 %v137
    %v495 = vunpack.c.h.b16 %v137
    %v496 = vunpack.c.l.b16 %v138
    %v497 = vunpack.c.h.b16 %v138
    %v498 = vunpack.c.l.b16 %v139
    %v499 = vunpack.c.h.b16 %v139
    %v500 = vunpack.c.l.b16 %v140
    %v501 = vunpack.c.h.b16 %v140
    %v502 = vunpack.c.l.b16 %v141
    %v503 = vunpack.c.h.b16 %v141
    %v504 = vunpack.c.l.b16 %v142
    %v505 = vunpack.c.h.b16 %v142
    %v506 = vunpack.c.l.b16 %v143
    %v507 = vunpack.c.h.b16 %v143
    %v508 = vunpack.c.l.b16 %v144
    %v509 = vunpack.c.h.b16 %v144
    %v510 = vunpack.c.l.b16 %v145
    %v511 = vunpack.c.h.b16 %v145
    %v512 = vunpack.c.l.b16 %v146
    %v513 = vunpack.c.h.b16 %v146
    %v514 = vunpack.c.l.b16 %v147
    %v515 = vunpack.c.h.b16 %v147
    %v516 = vunpack.c.l.b16 %v148
    %v517 = vunpack.c.h.b16 %v148
    %v518 = vunpack.c.l.b16 %v149
    %v519 = vunpack.c.h.b16 %v149
    %v520 = vunpack.c.l.b16 %v150
    %v521 = vunpack.c.h.b16 %v150
    %v522 = vunpack.c.l.b16 %v151
    %v523 = vunpack.c.h.b16 %v151
    %v524 = vunpack.c.l.b16 %v152
    %v525 = vunpack.c.h.b16 %v152
    %v526 = vunpack.c.l.b16 %v153
    %v527 = vunpack.c.h.b16 %v153
    %v528 = vunpack.c.l.b16 %v154
    %v529 = vunpack.c.h.b16 %v154
    %v530 = vunpack.c.l.b16 %v155
    %v531 = vunpack.c.h.b16 %v155
    %v532 = vunpack.c.l.b16 %v156
    %v533 = vunpack.c.h.b16 %v156
    %v534 = vunpack.c.l.b16 %v157
    %v535 = vunpack.c.h.b16 %v157
    %v536 = vunpack.c.l.b16 %v158
    %v537 = vunpack.c.h.b16 %v158
    %v538 = vunpack.c.l.b16 %v159
    %v539 = vunpack.c.h.b16 %v159
    %v540 = vunpack.c.l.b16 %v160
    %v541 = vunpack.c.h.b16 %v160
    %v542 = vunpack.c.l.b16 %v161
    %v543 = vunpack.c.h.b16 %v161
    %v544 = vunpack.c.l.b16 %v162
    %v545 = vunpack.c.h.b16 %v162
    %v546 = vunpack.c.l.b16 %v163
    %v547 = vunpack.c.h.b16 %v163
    %v548 = vunpack.c.l.b16 %v164
    %v549 = vunpack.c.h.b16 %v164
    %v550 = vunpack.c.l.b16 %v165
    %v551 = vunpack.c.h.b16 %v165
    %v552 = vunpack.c.l.b16 %v166
    %v553 = vunpack.c.h.b16 %v166
    %v554 = vunpack.c.l.b16 %v167
    %v555 = vunpack.c.h.b16 %v167
    %v556 = vunpack.c.l.b16 %v168
    %v557 = vunpack.c.h.b16 %v168
    %v558 = vunpack.c.l.b16 %v169
    %v559 = vunpack.c.h.b16 %v169
    %v560 = vunpack.c.l.b16 %v170
    %v561 = vunpack.c.h.b16 %v170
    %v562 = vunpack.c.l.b16 %v171
    %v563 = vunpack.c.h.b16 %v171
    %v564 = vunpack.c.l.b16 %v172
    %v565 = vunpack.c.h.b16 %v172
    %v566 = vunpack.c.l.b16 %v173
    %v567 = vunpack.c.h.b16 %v173
    %v568 = vunpack.c.l.b16 %v174
    %v569 = vunpack.c.h.b16 %v174
    %v570 = vunpack.c.l.b16 %v175
    %v571 = vunpack.c.h.b16 %v175
    %v572 = vunpack.c.l.b16 %v176
    %v573 = vunpack.c.h.b16 %v176
    %v574 = vunpack.c.l.b16 %v177
    %v575 = vunpack.c.h.b16 %v177
    %v576 = vunpack.c.l.b16 %v178
    %v577 = vunpack.c.h.b16 %v178
    %v578 = vunpack.c.l.b16 %v179
    %v579 = vunpack.c.h.b16 %v179
    %v580 = vunpack.c.l.b16 %v180
    %v581 = vunpack.c.h.b16 %v180
    %v582 = vunpack.c.l.b16 %v181
    %v583 = vunpack.c.h.b16 %v181
    %v584 = vunpack.c.l.b16 %v182
    %v585 = vunpack.c.h.b16 %v182
    %v586 = vunpack.c.l.b16 %v183
    %v587 = vunpack.c.h.b16 %v183
    %v588 = vunpack.c.l.b16 %v184
    %v589 = vunpack.c.h.b16 %v184
    %v590 = vunpack.c.l.b16 %v185
    %v591 = vunpack.c.h.b16 %v185
    %v592 = vunpack.c.l.b16 %v186
    %v593 = vunpack.c.h.b16 %v186
    %v594 = vunpack.c.l.b16 %v187
    %v595 = vunpack.c.h.b16 %v187
    %v596 = vpack.c.b16 %v344, %v340
    %v597 = vpack.c.b16 %v345, %v341
    %v598 = vpack.c.b16 %v346, %v342
    %v599 = vpack.c.b16 %v347, %v343
    %v600 = vpack.c.b16 %v352, %v348
    %v601 = vpack.c.b16 %v353, %v349
    %v602 = vpack.c.b16 %v354, %v350
    %v603 = vpack.c.b16 %v355, %v351
    %v604 = vpack.c.b16 %v360, %v356
    %v605 = vpack.c.b16 %v361, %v357
    %v606 = vpack.c.b16 %v362, %v358
    %v607 = vpack.c.b16 %v363, %v359
    %v608 = vpack.c.b16 %v368, %v364
    %v609 = vpack.c.b16 %v369, %v365
    %v610 = vpack.c.b16 %v370, %v366
    %v611 = vpack.c.b16 %v371, %v367
    %v612 = vpack.c.b16 %v376, %v372
    %v613 = vpack.c.b16 %v377, %v373
    %v614 = vpack.c.b16 %v378, %v374
    %v615 = vpack.c.b16 %v379, %v375
    %v616 = vpack.c.b16 %v384, %v380
    %v617 = vpack.c.b16 %v385, %v381
    %v618 = vpack.c.b16 %v386, %v382
    %v619 = vpack.c.b16 %v387, %v383
    %v620 = vpack.c.b16 %v392, %v388
    %v621 = vpack.c.b16 %v393, %v389
    %v622 = vpack.c.b16 %v394, %v390
    %v623 = vpack.c.b16 %v395, %v391
    %v624 = vpack.c.b16 %v400, %v396
    %v625 = vpack.c.b16 %v401, %v397
    %v626 = vpack.c.b16 %v402, %v398
    %v627 = vpack.c.b16 %v403, %v399
    %v628 = vpack.c.b16 %v408, %v404
    %v629 = vpack.c.b16 %v409, %v405
    %v630 = vpack.c.b16 %v410, %v406
    %v631 = vpack.c.b16 %v411, %v407
    %v632 = vpack.c.b16 %v416, %v412
    %v633 = vpack.c.b16 %v417, %v413
    %v634 = vpack.c.b16 %v418, %v414
    %v635 = vpack.c.b16 %v419, %v415
    %v636 = vpack.c.b16 %v424, %v420
    %v637 = vpack.c.b16 %v425, %v421
    %v638 = vpack.c.b16 %v426, %v422
    %v639 = vpack.c.b16 %v427, %v423
    %v640 = vpack.c.b16 %v432, %v428
    %v641 = vpack.c.b16 %v433, %v429
    %v642 = vpack.c.b16 %v434, %v430
    %v643 = vpack.c.b16 %v435, %v431
    %v644 = vpack.c.b16 %v440, %v436
    %v645 = vpack.c.b16 %v441, %v437
    %v646 = vpack.c.b16 %v442, %v438
    %v647 = vpack.c.b16 %v443, %v439
    %v648 = vpack.c.b16 %v448, %v444
    %v649 = vpack.c.b16 %v449, %v445
    %v650 = vpack.c.b16 %v450, %v446
    %v651 = vpack.c.b16 %v451, %v447
    %v652 = vpack.c.b16 %v456, %v452
    %v653 = vpack.c.b16 %v457, %v453
    %v654 = vpack.c.b16 %v458, %v454
    %v655 = vpack.c.b16 %v459, %v455
    %v656 = vpack.c.b16 %v464, %v460
    %v657 = vpack.c.b16 %v465, %v461
    %v658 = vpack.c.b16 %v466, %v462
    %v659 = vpack.c.b16 %v467, %v463
    %v660 = vpack.c.b16 %v472, %v468
    %v661 = vpack.c.b16 %v473, %v469
    %v662 = vpack.c.b16 %v474, %v470
    %v663 = vpack.c.b16 %v475, %v471
    %v664 = vpack.c.b16 %v480, %v476
    %v665 = vpack.c.b16 %v481, %v477
    %v666 = vpack.c.b16 %v482, %v478
    %v667 = vpack.c.b16 %v483, %v479
    %v668 = vpack.c.b16 %v488, %v484
    %v669 = vpack.c.b16 %v489, %v485
    %v670 = vpack.c.b16 %v490, %v486
    %v671 = vpack.c.b16 %v491, %v487
    %v672 = vpack.c.b16 %v496, %v492
    %v673 = vpack.c.b16 %v497, %v493
    %v674 = vpack.c.b16 %v498, %v494
    %v675 = vpack.c.b16 %v499, %v495
    %v676 = vpack.c.b16 %v504, %v500
    %v677 = vpack.c.b16 %v505, %v501
    %v678 = vpack.c.b16 %v506, %v502
    %v679 = vpack.c.b16 %v507, %v503
    %v680 = vpack.c.b16 %v512, %v508
    %v681 = vpack.c.b16 %v513, %v509
    %v682 = vpack.c.b16 %v514, %v510
    %v683 = vpack.c.b16 %v515, %v511
    %v684 = vpack.c.b16 %v520, %v516
    %v685 = vpack.c.b16 %v521, %v517
    %v686 = vpack.c.b16 %v522, %v518
    %v687 = vpack.c.b16 %v523, %v519
    %v688 = vpack.c.b16 %v528, %v524
    %v689 = vpack.c.b16 %v529, %v525
    %v690 = vpack.c.b16 %v530, %v526
    %v691 = vpack.c.b16 %v531, %v527
    %v692 = vpack.c.b16 %v536, %v532
    %v693 = vpack.c.b16 %v537, %v533
    %v694 = vpack.c.b16 %v538, %v534
    %v695 = vpack.c.b16 %v539, %v535
    %v696 = vpack.c.b16 %v544, %v540
    %v697 = vpack.c.b16 %v545, %v541
    %v698 = vpack.c.b16 %v546, %v542
    %v699 = vpack.c.b16 %v547, %v543
    %v700 = vpack.c.b16 %v552, %v548
    %v701 = vpack.c.b16 %v553, %v549
    %v702 = vpack.c.b16 %v554, %v550
    %v703 = vpack.c.b16 %v555, %v551
    %v704 = vpack.c.b16 %v560, %v556
    %v705 = vpack.c.b16 %v561, %v557
    %v706 = vpack.c.b16 %v562, %v558
    %v707 = vpack.c.b16 %v563, %v559
    %v708 = vpack.c.b16 %v568, %v564
    %v709 = vpack.c.b16 %v569, %v565
    %v710 = vpack.c.b16 %v570, %v566
    %v711 = vpack.c.b16 %v571, %v567
    %v712 = vpack.c.b16 %v576, %v572
    %v713 = vpack.c.b16 %v577, %v573
    %v714 = vpack.c.b16 %v578, %v574
    %v715 = vpack.c.b16 %v579, %v575
    %v716 = vpack.c.b16 %v584, %v580
    %v717 = vpack.c.b16 %v585, %v581
    %v718 = vpack.c.b16 %v586, %v582
    %v719 = vpack.c.b16 %v587, %v583
    %v720 = vpack.c.b16 %v592, %v588
    %v721 = vpack.c.b16 %v593, %v589
    %v722 = vpack.c.b16 %v594, %v590
    %v723 = vpack.c.b16 %v595, %v591
    %852 = vmatpush.bf16.msra.mxu0 %v624
    %853 = vmatpush.bf16.msra.mxu0 %v620
    %854 = vmatpush.bf16.msra.mxu0 %v616
    %855 = vmatpush.bf16.msra.mxu0 %v612
    %856 = vmatpush.bf16.msra.mxu0 %v608
    %857 = vmatpush.bf16.msra.mxu0 %v604
    %858 = vmatpush.bf16.msra.mxu0 %v600
    %859 = vmatpush.bf16.msra.mxu0 %v596
    %860 = vmatmul.bf16.gmra.mxu0 %v204
    %v861 = vpop.f32.mrf.mxu0
    %v862 = vadd.f32 %v190, %v861
    %v863 = vpop.f32.mrf.mxu0
    %864 = vdwg.mxu0
    %865 = vmatpush.bf16.msra.mxu0 %v656
    %866 = vmatpush.bf16.msra.mxu0 %v652
    %867 = vmatpush.bf16.msra.mxu0 %v648
    %868 = vmatpush.bf16.msra.mxu0 %v644
    %869 = vmatpush.bf16.msra.mxu0 %v640
    %870 = vmatpush.bf16.msra.mxu0 %v636
    %871 = vmatpush.bf16.msra.mxu0 %v632
    %872 = vmatpush.bf16.msra.mxu0 %v628
    %873 = vmatmul.bf16.gmra.mxu0 %v205
    %v874 = vpop.f32.mrf.mxu0
    %v875 = vadd.f32 %v862, %v874
    %v876 = vpop.f32.mrf.mxu0
    %877 = vdwg.mxu0
    %878 = vmatpush.bf16.msra.mxu0 %v688
    %879 = vmatpush.bf16.msra.mxu0 %v684
    %880 = vmatpush.bf16.msra.mxu0 %v680
    %881 = vmatpush.bf16.msra.mxu0 %v676
    %882 = vmatpush.bf16.msra.mxu0 %v672
    %883 = vmatpush.bf16.msra.mxu0 %v668
    %884 = vmatpush.bf16.msra.mxu0 %v664
    %885 = vmatpush.bf16.msra.mxu0 %v660
    %886 = vmatmul.bf16.gmra.mxu0 %v206
    %v887 = vpop.f32.mrf.mxu0
    %v888 = vadd.f32 %v875, %v887
    %v889 = vpop.f32.mrf.mxu0
    %890 = vdwg.mxu0
    %891 = vmatpush.bf16.msra.mxu0 %v720
    %892 = vmatpush.bf16.msra.mxu0 %v716
    %893 = vmatpush.bf16.msra.mxu0 %v712
    %894 = vmatpush.bf16.msra.mxu0 %v708
    %895 = vmatpush.bf16.msra.mxu0 %v704
    %896 = vmatpush.bf16.msra.mxu0 %v700
    %897 = vmatpush.bf16.msra.mxu0 %v696
    %898 = vmatpush.bf16.msra.mxu0 %v692
    %899 = vmatmul.bf16.gmra.mxu0 %v207
    %v900 = vpop.f32.mrf.mxu0
    %v901 = vadd.f32 %v888, %v900
    %v902 = vpop.f32.mrf.mxu0
    %903 = vdwg.mxu0
    %904 = vmatpush.bf16.msra.mxu0 %v625
    %905 = vmatpush.bf16.msra.mxu0 %v621
    %906 = vmatpush.bf16.msra.mxu0 %v617
    %907 = vmatpush.bf16.msra.mxu0 %v613
    %908 = vmatpush.bf16.msra.mxu0 %v609
    %909 = vmatpush.bf16.msra.mxu0 %v605
    %910 = vmatpush.bf16.msra.mxu0 %v601
    %911 = vmatpush.bf16.msra.mxu0 %v597
    %912 = vmatmul.bf16.gmra.mxu0 %v204
    %v913 = vpop.f32.mrf.mxu0
    %v914 = vadd.f32 %v191, %v913
    %v915 = vpop.f32.mrf.mxu0
    %916 = vdwg.mxu0
    %917 = vmatpush.bf16.msra.mxu0 %v657
    %918 = vmatpush.bf16.msra.mxu0 %v653
    %919 = vmatpush.bf16.msra.mxu0 %v649
    %920 = vmatpush.bf16.msra.mxu0 %v645
    %921 = vmatpush.bf16.msra.mxu0 %v641
    %922 = vmatpush.bf16.msra.mxu0 %v637
    %923 = vmatpush.bf16.msra.mxu0 %v633
    %924 = vmatpush.bf16.msra.mxu0 %v629
    %925 = vmatmul.bf16.gmra.mxu0 %v205
    %v926 = vpop.f32.mrf.mxu0
    %v927 = vadd.f32 %v914, %v926
    %v928 = vpop.f32.mrf.mxu0
    %929 = vdwg.mxu0
    %930 = vmatpush.bf16.msra.mxu0 %v689
    %931 = vmatpush.bf16.msra.mxu0 %v685
    %932 = vmatpush.bf16.msra.mxu0 %v681
    %933 = vmatpush.bf16.msra.mxu0 %v677
    %934 = vmatpush.bf16.msra.mxu0 %v673
    %935 = vmatpush.bf16.msra.mxu0 %v669
    %936 = vmatpush.bf16.msra.mxu0 %v665
    %937 = vmatpush.bf16.msra.mxu0 %v661
    %938 = vmatmul.bf16.gmra.mxu0 %v206
    %v939 = vpop.f32.mrf.mxu0
    %v940 = vadd.f32 %v927, %v939
    %v941 = vpop.f32.mrf.mxu0
    %942 = vdwg.mxu0
    %943 = vmatpush.bf16.msra.mxu0 %v721
    %944 = vmatpush.bf16.msra.mxu0 %v717
    %945 = vmatpush.bf16.msra.mxu0 %v713
    %946 = vmatpush.bf16.msra.mxu0 %v709
    %947 = vmatpush.bf16.msra.mxu0 %v705
    %948 = vmatpush.bf16.msra.mxu0 %v701
    %949 = vmatpush.bf16.msra.mxu0 %v697
    %950 = vmatpush.bf16.msra.mxu0 %v693
    %951 = vmatmul.bf16.gmra.mxu0 %v207
    %v952 = vpop.f32.mrf.mxu0
    %v953 = vadd.f32 %v940, %v952
    %v954 = vpop.f32.mrf.mxu0
    %955 = vdwg.mxu0
    %956 = vmatpush.bf16.msra.mxu0 %v626
    %957 = vmatpush.bf16.msra.mxu0 %v622
    %958 = vmatpush.bf16.msra.mxu0 %v618
    %959 = vmatpush.bf16.msra.mxu0 %v614
    %960 = vmatpush.bf16.msra.mxu0 %v610
    %961 = vmatpush.bf16.msra.mxu0 %v606
    %962 = vmatpush.bf16.msra.mxu0 %v602
    %963 = vmatpush.bf16.msra.mxu0 %v598
    %964 = vmatmul.bf16.gmra.mxu0 %v204
    %v965 = vpop.f32.mrf.mxu0
    %v966 = vadd.f32 %v192, %v965
    %v967 = vpop.f32.mrf.mxu0
    %968 = vdwg.mxu0
    %969 = vmatpush.bf16.msra.mxu0 %v658
    %970 = vmatpush.bf16.msra.mxu0 %v654
    %971 = vmatpush.bf16.msra.mxu0 %v650
    %972 = vmatpush.bf16.msra.mxu0 %v646
    %973 = vmatpush.bf16.msra.mxu0 %v642
    %974 = vmatpush.bf16.msra.mxu0 %v638
    %975 = vmatpush.bf16.msra.mxu0 %v634
    %976 = vmatpush.bf16.msra.mxu0 %v630
    %977 = vmatmul.bf16.gmra.mxu0 %v205
    %v978 = vpop.f32.mrf.mxu0
    %v979 = vadd.f32 %v966, %v978
    %v980 = vpop.f32.mrf.mxu0
    %981 = vdwg.mxu0
    %982 = vmatpush.bf16.msra.mxu0 %v690
    %983 = vmatpush.bf16.msra.mxu0 %v686
    %984 = vmatpush.bf16.msra.mxu0 %v682
    %985 = vmatpush.bf16.msra.mxu0 %v678
    %986 = vmatpush.bf16.msra.mxu0 %v674
    %987 = vmatpush.bf16.msra.mxu0 %v670
    %988 = vmatpush.bf16.msra.mxu0 %v666
    %989 = vmatpush.bf16.msra.mxu0 %v662
    %990 = vmatmul.bf16.gmra.mxu0 %v206
    %v991 = vpop.f32.mrf.mxu0
    %v992 = vadd.f32 %v979, %v991
    %v993 = vpop.f32.mrf.mxu0
    %994 = vdwg.mxu0
    %995 = vmatpush.bf16.msra.mxu0 %v722
    %996 = vmatpush.bf16.msra.mxu0 %v718
    %997 = vmatpush.bf16.msra.mxu0 %v714
    %998 = vmatpush.bf16.msra.mxu0 %v710
    %999 = vmatpush.bf16.msra.mxu0 %v706
    %1000 = vmatpush.bf16.msra.mxu0 %v702
    %1001 = vmatpush.bf16.msra.mxu0 %v698
    %1002 = vmatpush.bf16.msra.mxu0 %v694
    %1003 = vmatmul.bf16.gmra.mxu0 %v207
    %v1004 = vpop.f32.mrf.mxu0
    %v1005 = vadd.f32 %v992, %v1004
    %v1006 = vpop.f32.mrf.mxu0
    %1007 = vdwg.mxu0
    %1008 = vmatpush.bf16.msra.mxu0 %v627
    %1009 = vmatpush.bf16.msra.mxu0 %v623
    %1010 = vmatpush.bf16.msra.mxu0 %v619
    %1011 = vmatpush.bf16.msra.mxu0 %v615
    %1012 = vmatpush.bf16.msra.mxu0 %v611
    %1013 = vmatpush.bf16.msra.mxu0 %v607
    %1014 = vmatpush.bf16.msra.mxu0 %v603
    %1015 = vmatpush.bf16.msra.mxu0 %v599
    %1016 = vmatmul.bf16.gmra.mxu0 %v204
    %v1017 = vpop.f32.mrf.mxu0
    %v1018 = vadd.f32 %v193, %v1017
    %v1019 = vpop.f32.mrf.mxu0
    %1020 = vdwg.mxu0
    %1021 = vmatpush.bf16.msra.mxu0 %v659
    %1022 = vmatpush.bf16.msra.mxu0 %v655
    %1023 = vmatpush.bf16.msra.mxu0 %v651
    %1024 = vmatpush.bf16.msra.mxu0 %v647
    %1025 = vmatpush.bf16.msra.mxu0 %v643
    %1026 = vmatpush.bf16.msra.mxu0 %v639
    %1027 = vmatpush.bf16.msra.mxu0 %v635
    %1028 = vmatpush.bf16.msra.mxu0 %v631
    %1029 = vmatmul.bf16.gmra.mxu0 %v205
    %v1030 = vpop.f32.mrf.mxu0
    %v1031 = vadd.f32 %v1018, %v1030
    %v1032 = vpop.f32.mrf.mxu0
    %1033 = vdwg.mxu0
    %1034 = vmatpush.bf16.msra.mxu0 %v691
    %1035 = vmatpush.bf16.msra.mxu0 %v687
    %1036 = vmatpush.bf16.msra.mxu0 %v683
    %1037 = vmatpush.bf16.msra.mxu0 %v679
    %1038 = vmatpush.bf16.msra.mxu0 %v675
    %1039 = vmatpush.bf16.msra.mxu0 %v671
    %1040 = vmatpush.bf16.msra.mxu0 %v667
    %1041 = vmatpush.bf16.msra.mxu0 %v663
    %1042 = vmatmul.bf16.gmra.mxu0 %v206
    %v1043 = vpop.f32.mrf.mxu0
    %v1044 = vadd.f32 %v1031, %v1043
    %v1045 = vpop.f32.mrf.mxu0
    %1046 = vdwg.mxu0
    %1047 = vmatpush.bf16.msra.mxu0 %v723
    %1048 = vmatpush.bf16.msra.mxu0 %v719
    %1049 = vmatpush.bf16.msra.mxu0 %v715
    %1050 = vmatpush.bf16.msra.mxu0 %v711
    %1051 = vmatpush.bf16.msra.mxu0 %v707
    %1052 = vmatpush.bf16.msra.mxu0 %v703
    %1053 = vmatpush.bf16.msra.mxu0 %v699
    %1054 = vmatpush.bf16.msra.mxu0 %v695
    %1055 = vmatmul.bf16.gmra.mxu0 %v207
    %v1056 = vpop.f32.mrf.mxu0
    %v1057 = vadd.f32 %v1044, %v1056
    %v1058 = vpop.f32.mrf.mxu0
    %1059 = vdwg.mxu0
    %1060 = vst [vmem:[#allocation5] sm:$0xff] %v901
    %1061 = vst [vmem:[#allocation5 + $0x8] sm:$0xff] %v953
    %1062 = vst [vmem:[#allocation5 + $0x10] sm:$0xff] %v1005
    %1063 = vst [vmem:[#allocation5 + $0x18] sm:$0xff] %v1057
    %v1064 = vpack.c.bf16 %v901, %v901
    %v1065 = vpack.c.bf16 %v953, %v953
    %v1066 = vpack.c.bf16 %v1005, %v1005
    %v1067 = vpack.c.bf16 %v1057, %v1057
    %v1068 = vld [vmem:[#allocation2] sm:$0xff]
    %v1069 = vld [vmem:[#allocation2 + $0x8] sm:$0xff]
    %v1070 = vld [vmem:[#allocation2 + $0x10] sm:$0xff]
    %v1071 = vld [vmem:[#allocation2 + $0x18] sm:$0xff]
    %v1072 = vld [vmem:[#allocation2 + $0x20] sm:$0xff]
    %v1073 = vld [vmem:[#allocation2 + $0x28] sm:$0xff]
    %v1074 = vld [vmem:[#allocation2 + $0x30] sm:$0xff]
    %v1075 = vld [vmem:[#allocation2 + $0x38] sm:$0xff]
    %v1076 = vld [vmem:[#allocation2 + $0x40] sm:$0xff]
    %v1077 = vld [vmem:[#allocation2 + $0x48] sm:$0xff]
    %v1078 = vld [vmem:[#allocation2 + $0x50] sm:$0xff]
    %v1079 = vld [vmem:[#allocation2 + $0x58] sm:$0xff]
    %v1080 = vld [vmem:[#allocation2 + $0x60] sm:$0xff]
    %v1081 = vld [vmem:[#allocation2 + $0x68] sm:$0xff]
    %v1082 = vld [vmem:[#allocation2 + $0x70] sm:$0xff]
    %v1083 = vld [vmem:[#allocation2 + $0x78] sm:$0xff]
    %v1084 = vld [vmem:[#allocation2 + $0x80] sm:$0xff]
    %v1085 = vld [vmem:[#allocation2 + $0x88] sm:$0xff]
    %v1086 = vld [vmem:[#allocation2 + $0x90] sm:$0xff]
    %v1087 = vld [vmem:[#allocation2 + $0x98] sm:$0xff]
    %v1088 = vld [vmem:[#allocation2 + $0xa0] sm:$0xff]
    %v1089 = vld [vmem:[#allocation2 + $0xa8] sm:$0xff]
    %v1090 = vld [vmem:[#allocation2 + $0xb0] sm:$0xff]
    %v1091 = vld [vmem:[#allocation2 + $0xb8] sm:$0xff]
    %v1092 = vld [vmem:[#allocation2 + $0xc0] sm:$0xff]
    %v1093 = vld [vmem:[#allocation2 + $0xc8] sm:$0xff]
    %v1094 = vld [vmem:[#allocation2 + $0xd0] sm:$0xff]
    %v1095 = vld [vmem:[#allocation2 + $0xd8] sm:$0xff]
    %v1096 = vld [vmem:[#allocation2 + $0xe0] sm:$0xff]
    %v1097 = vld [vmem:[#allocation2 + $0xe8] sm:$0xff]
    %v1098 = vld [vmem:[#allocation2 + $0xf0] sm:$0xff]
    %v1099 = vld [vmem:[#allocation2 + $0xf8] sm:$0xff]
    %v1100 = vld [vmem:[#allocation2 + $0x100] sm:$0xff]
    %v1101 = vld [vmem:[#allocation2 + $0x108] sm:$0xff]
    %v1102 = vld [vmem:[#allocation2 + $0x110] sm:$0xff]
    %v1103 = vld [vmem:[#allocation2 + $0x118] sm:$0xff]
    %v1104 = vld [vmem:[#allocation2 + $0x120] sm:$0xff]
    %v1105 = vld [vmem:[#allocation2 + $0x128] sm:$0xff]
    %v1106 = vld [vmem:[#allocation2 + $0x130] sm:$0xff]
    %v1107 = vld [vmem:[#allocation2 + $0x138] sm:$0xff]
    %v1108 = vld [vmem:[#allocation2 + $0x140] sm:$0xff]
    %v1109 = vld [vmem:[#allocation2 + $0x148] sm:$0xff]
    %v1110 = vld [vmem:[#allocation2 + $0x150] sm:$0xff]
    %v1111 = vld [vmem:[#allocation2 + $0x158] sm:$0xff]
    %v1112 = vld [vmem:[#allocation2 + $0x160] sm:$0xff]
    %v1113 = vld [vmem:[#allocation2 + $0x168] sm:$0xff]
    %v1114 = vld [vmem:[#allocation2 + $0x170] sm:$0xff]
    %v1115 = vld [vmem:[#allocation2 + $0x178] sm:$0xff]
    %v1116 = vld [vmem:[#allocation2 + $0x180] sm:$0xff]
    %v1117 = vld [vmem:[#allocation2 + $0x188] sm:$0xff]
    %v1118 = vld [vmem:[#allocation2 + $0x190] sm:$0xff]
    %v1119 = vld [vmem:[#allocation2 + $0x198] sm:$0xff]
    %v1120 = vld [vmem:[#allocation2 + $0x1a0] sm:$0xff]
    %v1121 = vld [vmem:[#allocation2 + $0x1a8] sm:$0xff]
    %v1122 = vld [vmem:[#allocation2 + $0x1b0] sm:$0xff]
    %v1123 = vld [vmem:[#allocation2 + $0x1b8] sm:$0xff]
    %v1124 = vld [vmem:[#allocation2 + $0x1c0] sm:$0xff]
    %v1125 = vld [vmem:[#allocation2 + $0x1c8] sm:$0xff]
    %v1126 = vld [vmem:[#allocation2 + $0x1d0] sm:$0xff]
    %v1127 = vld [vmem:[#allocation2 + $0x1d8] sm:$0xff]
    %v1128 = vld [vmem:[#allocation2 + $0x1e0] sm:$0xff]
    %v1129 = vld [vmem:[#allocation2 + $0x1e8] sm:$0xff]
    %v1130 = vld [vmem:[#allocation2 + $0x1f0] sm:$0xff]
    %v1131 = vld [vmem:[#allocation2 + $0x1f8] sm:$0xff]
    %v1132 = vld [vmem:[%s4] sm:$0x3]
    %v1134 = vperm.slane %v1132, 0
    %v1135 = vperm.slane %v1132, 1
    %v1202 = vunpack.c.l.b16 %v1068
    %v1203 = vunpack.c.h.b16 %v1068
    %v1204 = vunpack.c.l.b16 %v1069
    %v1205 = vunpack.c.h.b16 %v1069
    %v1206 = vunpack.c.l.b16 %v1070
    %v1207 = vunpack.c.h.b16 %v1070
    %v1208 = vunpack.c.l.b16 %v1071
    %v1209 = vunpack.c.h.b16 %v1071
    %v1210 = vunpack.c.l.b16 %v1072
    %v1211 = vunpack.c.h.b16 %v1072
    %v1212 = vunpack.c.l.b16 %v1073
    %v1213 = vunpack.c.h.b16 %v1073
    %v1214 = vunpack.c.l.b16 %v1074
    %v1215 = vunpack.c.h.b16 %v1074
    %v1216 = vunpack.c.l.b16 %v1075
    %v1217 = vunpack.c.h.b16 %v1075
    %v1218 = vunpack.c.l.b16 %v1076
    %v1219 = vunpack.c.h.b16 %v1076
    %v1220 = vunpack.c.l.b16 %v1077
    %v1221 = vunpack.c.h.b16 %v1077
    %v1222 = vunpack.c.l.b16 %v1078
    %v1223 = vunpack.c.h.b16 %v1078
    %v1224 = vunpack.c.l.b16 %v1079
    %v1225 = vunpack.c.h.b16 %v1079
    %v1226 = vunpack.c.l.b16 %v1080
    %v1227 = vunpack.c.h.b16 %v1080
    %v1228 = vunpack.c.l.b16 %v1081
    %v1229 = vunpack.c.h.b16 %v1081
    %v1230 = vunpack.c.l.b16 %v1082
    %v1231 = vunpack.c.h.b16 %v1082
    %v1232 = vunpack.c.l.b16 %v1083
    %v1233 = vunpack.c.h.b16 %v1083
    %v1234 = vunpack.c.l.b16 %v1084
    %v1235 = vunpack.c.h.b16 %v1084
    %v1236 = vunpack.c.l.b16 %v1085
    %v1237 = vunpack.c.h.b16 %v1085
    %v1238 = vunpack.c.l.b16 %v1086
    %v1239 = vunpack.c.h.b16 %v1086
    %v1240 = vunpack.c.l.b16 %v1087
    %v1241 = vunpack.c.h.b16 %v1087
    %v1242 = vunpack.c.l.b16 %v1088
    %v1243 = vunpack.c.h.b16 %v1088
    %v1244 = vunpack.c.l.b16 %v1089
    %v1245 = vunpack.c.h.b16 %v1089
    %v1246 = vunpack.c.l.b16 %v1090
    %v1247 = vunpack.c.h.b16 %v1090
    %v1248 = vunpack.c.l.b16 %v1091
    %v1249 = vunpack.c.h.b16 %v1091
    %v1250 = vunpack.c.l.b16 %v1092
    %v1251 = vunpack.c.h.b16 %v1092
    %v1252 = vunpack.c.l.b16 %v1093
    %v1253 = vunpack.c.h.b16 %v1093
    %v1254 = vunpack.c.l.b16 %v1094
    %v1255 = vunpack.c.h.b16 %v1094
    %v1256 = vunpack.c.l.b16 %v1095
    %v1257 = vunpack.c.h.b16 %v1095
    %v1258 = vunpack.c.l.b16 %v1096
    %v1259 = vunpack.c.h.b16 %v1096
    %v1260 = vunpack.c.l.b16 %v1097
    %v1261 = vunpack.c.h.b16 %v1097
    %v1262 = vunpack.c.l.b16 %v1098
    %v1263 = vunpack.c.h.b16 %v1098
    %v1264 = vunpack.c.l.b16 %v1099
    %v1265 = vunpack.c.h.b16 %v1099
    %v1266 = vunpack.c.l.b16 %v1100
    %v1267 = vunpack.c.h.b16 %v1100
    %v1268 = vunpack.c.l.b16 %v1101
    %v1269 = vunpack.c.h.b16 %v1101
    %v1270 = vunpack.c.l.b16 %v1102
    %v1271 = vunpack.c.h.b16 %v1102
    %v1272 = vunpack.c.l.b16 %v1103
    %v1273 = vunpack.c.h.b16 %v1103
    %v1274 = vunpack.c.l.b16 %v1104
    %v1275 = vunpack.c.h.b16 %v1104
    %v1276 = vunpack.c.l.b16 %v1105
    %v1277 = vunpack.c.h.b16 %v1105
    %v1278 = vunpack.c.l.b16 %v1106
    %v1279 = vunpack.c.h.b16 %v1106
    %v1280 = vunpack.c.l.b16 %v1107
    %v1281 = vunpack.c.h.b16 %v1107
    %v1282 = vunpack.c.l.b16 %v1108
    %v1283 = vunpack.c.h.b16 %v1108
    %v1284 = vunpack.c.l.b16 %v1109
    %v1285 = vunpack.c.h.b16 %v1109
    %v1286 = vunpack.c.l.b16 %v1110
    %v1287 = vunpack.c.h.b16 %v1110
    %v1288 = vunpack.c.l.b16 %v1111
    %v1289 = vunpack.c.h.b16 %v1111
    %v1290 = vunpack.c.l.b16 %v1112
    %v1291 = vunpack.c.h.b16 %v1112
    %v1292 = vunpack.c.l.b16 %v1113
    %v1293 = vunpack.c.h.b16 %v1113
    %v1294 = vunpack.c.l.b16 %v1114
    %v1295 = vunpack.c.h.b16 %v1114
    %v1296 = vunpack.c.l.b16 %v1115
    %v1297 = vunpack.c.h.b16 %v1115
    %v1298 = vunpack.c.l.b16 %v1116
    %v1299 = vunpack.c.h.b16 %v1116
    %v1300 = vunpack.c.l.b16 %v1117
    %v1301 = vunpack.c.h.b16 %v1117
    %v1302 = vunpack.c.l.b16 %v1118
    %v1303 = vunpack.c.h.b16 %v1118
    %v1304 = vunpack.c.l.b16 %v1119
    %v1305 = vunpack.c.h.b16 %v1119
    %v1306 = vunpack.c.l.b16 %v1120
    %v1307 = vunpack.c.h.b16 %v1120
    %v1308 = vunpack.c.l.b16 %v1121
    %v1309 = vunpack.c.h.b16 %v1121
    %v1310 = vunpack.c.l.b16 %v1122
    %v1311 = vunpack.c.h.b16 %v1122
    %v1312 = vunpack.c.l.b16 %v1123
    %v1313 = vunpack.c.h.b16 %v1123
    %v1314 = vunpack.c.l.b16 %v1124
    %v1315 = vunpack.c.h.b16 %v1124
    %v1316 = vunpack.c.l.b16 %v1125
    %v1317 = vunpack.c.h.b16 %v1125
    %v1318 = vunpack.c.l.b16 %v1126
    %v1319 = vunpack.c.h.b16 %v1126
    %v1320 = vunpack.c.l.b16 %v1127
    %v1321 = vunpack.c.h.b16 %v1127
    %v1322 = vunpack.c.l.b16 %v1128
    %v1323 = vunpack.c.h.b16 %v1128
    %v1324 = vunpack.c.l.b16 %v1129
    %v1325 = vunpack.c.h.b16 %v1129
    %v1326 = vunpack.c.l.b16 %v1130
    %v1327 = vunpack.c.h.b16 %v1130
    %v1328 = vunpack.c.l.b16 %v1131
    %v1329 = vunpack.c.h.b16 %v1131
    %v1330 = vpack.c.b16 %v1204, %v1202
    %v1331 = vpack.c.b16 %v1205, %v1203
    %v1332 = vpack.c.b16 %v1208, %v1206
    %v1333 = vpack.c.b16 %v1209, %v1207
    %v1334 = vpack.c.b16 %v1212, %v1210
    %v1335 = vpack.c.b16 %v1213, %v1211
    %v1336 = vpack.c.b16 %v1216, %v1214
    %v1337 = vpack.c.b16 %v1217, %v1215
    %v1338 = vpack.c.b16 %v1220, %v1218
    %v1339 = vpack.c.b16 %v1221, %v1219
    %v1340 = vpack.c.b16 %v1224, %v1222
    %v1341 = vpack.c.b16 %v1225, %v1223
    %v1342 = vpack.c.b16 %v1228, %v1226
    %v1343 = vpack.c.b16 %v1229, %v1227
    %v1344 = vpack.c.b16 %v1232, %v1230
    %v1345 = vpack.c.b16 %v1233, %v1231
    %v1346 = vpack.c.b16 %v1236, %v1234
    %v1347 = vpack.c.b16 %v1237, %v1235
    %v1348 = vpack.c.b16 %v1240, %v1238
    %v1349 = vpack.c.b16 %v1241, %v1239
    %v1350 = vpack.c.b16 %v1244, %v1242
    %v1351 = vpack.c.b16 %v1245, %v1243
    %v1352 = vpack.c.b16 %v1248, %v1246
    %v1353 = vpack.c.b16 %v1249, %v1247
    %v1354 = vpack.c.b16 %v1252, %v1250
    %v1355 = vpack.c.b16 %v1253, %v1251
    %v1356 = vpack.c.b16 %v1256, %v1254
    %v1357 = vpack.c.b16 %v1257, %v1255
    %v1358 = vpack.c.b16 %v1260, %v1258
    %v1359 = vpack.c.b16 %v1261, %v1259
    %v1360 = vpack.c.b16 %v1264, %v1262
    %v1361 = vpack.c.b16 %v1265, %v1263
    %v1362 = vpack.c.b16 %v1268, %v1266
    %v1363 = vpack.c.b16 %v1269, %v1267
    %v1364 = vpack.c.b16 %v1272, %v1270
    %v1365 = vpack.c.b16 %v1273, %v1271
    %v1366 = vpack.c.b16 %v1276, %v1274
    %v1367 = vpack.c.b16 %v1277, %v1275
    %v1368 = vpack.c.b16 %v1280, %v1278
    %v1369 = vpack.c.b16 %v1281, %v1279
    %v1370 = vpack.c.b16 %v1284, %v1282
    %v1371 = vpack.c.b16 %v1285, %v1283
    %v1372 = vpack.c.b16 %v1288, %v1286
    %v1373 = vpack.c.b16 %v1289, %v1287
    %v1374 = vpack.c.b16 %v1292, %v1290
    %v1375 = vpack.c.b16 %v1293, %v1291
    %v1376 = vpack.c.b16 %v1296, %v1294
    %v1377 = vpack.c.b16 %v1297, %v1295
    %v1378 = vpack.c.b16 %v1300, %v1298
    %v1379 = vpack.c.b16 %v1301, %v1299
    %v1380 = vpack.c.b16 %v1304, %v1302
    %v1381 = vpack.c.b16 %v1305, %v1303
    %v1382 = vpack.c.b16 %v1308, %v1306
    %v1383 = vpack.c.b16 %v1309, %v1307
    %v1384 = vpack.c.b16 %v1312, %v1310
    %v1385 = vpack.c.b16 %v1313, %v1311
    %v1386 = vpack.c.b16 %v1316, %v1314
    %v1387 = vpack.c.b16 %v1317, %v1315
    %v1388 = vpack.c.b16 %v1320, %v1318
    %v1389 = vpack.c.b16 %v1321, %v1319
    %v1390 = vpack.c.b16 %v1324, %v1322
    %v1391 = vpack.c.b16 %v1325, %v1323
    %v1392 = vpack.c.b16 %v1328, %v1326
    %v1393 = vpack.c.b16 %v1329, %v1327
    %1458 = vmatpush.bf16.msra.mxu0 %v1344
    %1459 = vmatpush.bf16.msra.mxu0 %v1342
    %1460 = vmatpush.bf16.msra.mxu0 %v1340
    %1461 = vmatpush.bf16.msra.mxu0 %v1338
    %1462 = vmatpush.bf16.msra.mxu0 %v1336
    %1463 = vmatpush.bf16.msra.mxu0 %v1334
    %1464 = vmatpush.bf16.msra.mxu0 %v1332
    %1465 = vmatpush.bf16.msra.mxu0 %v1330
    %1466 = vmatmul.bf16.gmra.mxu0 %v1064
    %v1467 = vpop.f32.mrf.mxu0
    %v1468 = vadd.f32 %v1134, %v1467
    %v1469 = vpop.f32.mrf.mxu0
    %1470 = vdwg.mxu0
    %1471 = vmatpush.bf16.msra.mxu0 %v1360
    %1472 = vmatpush.bf16.msra.mxu0 %v1358
    %1473 = vmatpush.bf16.msra.mxu0 %v1356
    %1474 = vmatpush.bf16.msra.mxu0 %v1354
    %1475 = vmatpush.bf16.msra.mxu0 %v1352
    %1476 = vmatpush.bf16.msra.mxu0 %v1350
    %1477 = vmatpush.bf16.msra.mxu0 %v1348
    %1478 = vmatpush.bf16.msra.mxu0 %v1346
    %1479 = vmatmul.bf16.gmra.mxu0 %v1065
    %v1480 = vpop.f32.mrf.mxu0
    %v1481 = vadd.f32 %v1468, %v1480
    %v1482 = vpop.f32.mrf.mxu0
    %1483 = vdwg.mxu0
    %1484 = vmatpush.bf16.msra.mxu0 %v1376
    %1485 = vmatpush.bf16.msra.mxu0 %v1374
    %1486 = vmatpush.bf16.msra.mxu0 %v1372
    %1487 = vmatpush.bf16.msra.mxu0 %v1370
    %1488 = vmatpush.bf16.msra.mxu0 %v1368
    %1489 = vmatpush.bf16.msra.mxu0 %v1366
    %1490 = vmatpush.bf16.msra.mxu0 %v1364
    %1491 = vmatpush.bf16.msra.mxu0 %v1362
    %1492 = vmatmul.bf16.gmra.mxu0 %v1066
    %v1493 = vpop.f32.mrf.mxu0
    %v1494 = vadd.f32 %v1481, %v1493
    %v1495 = vpop.f32.mrf.mxu0
    %1496 = vdwg.mxu0
    %1497 = vmatpush.bf16.msra.mxu0 %v1392
    %1498 = vmatpush.bf16.msra.mxu0 %v1390
    %1499 = vmatpush.bf16.msra.mxu0 %v1388
    %1500 = vmatpush.bf16.msra.mxu0 %v1386
    %1501 = vmatpush.bf16.msra.mxu0 %v1384
    %1502 = vmatpush.bf16.msra.mxu0 %v1382
    %1503 = vmatpush.bf16.msra.mxu0 %v1380
    %1504 = vmatpush.bf16.msra.mxu0 %v1378
    %1505 = vmatmul.bf16.gmra.mxu0 %v1067
    %v1506 = vpop.f32.mrf.mxu0
    %v1507 = vadd.f32 %v1494, %v1506
    %v1508 = vpop.f32.mrf.mxu0
    %1509 = vdwg.mxu0
    %1510 = vmatpush.bf16.msra.mxu0 %v1345
    %1511 = vmatpush.bf16.msra.mxu0 %v1343
    %1512 = vmatpush.bf16.msra.mxu0 %v1341
    %1513 = vmatpush.bf16.msra.mxu0 %v1339
    %1514 = vmatpush.bf16.msra.mxu0 %v1337
    %1515 = vmatpush.bf16.msra.mxu0 %v1335
    %1516 = vmatpush.bf16.msra.mxu0 %v1333
    %1517 = vmatpush.bf16.msra.mxu0 %v1331
    %1518 = vmatmul.bf16.gmra.mxu0 %v1064
    %v1519 = vpop.f32.mrf.mxu0
    %v1520 = vadd.f32 %v1135, %v1519
    %v1521 = vpop.f32.mrf.mxu0
    %1522 = vdwg.mxu0
    %1523 = vmatpush.bf16.msra.mxu0 %v1361
    %1524 = vmatpush.bf16.msra.mxu0 %v1359
    %1525 = vmatpush.bf16.msra.mxu0 %v1357
    %1526 = vmatpush.bf16.msra.mxu0 %v1355
    %1527 = vmatpush.bf16.msra.mxu0 %v1353
    %1528 = vmatpush.bf16.msra.mxu0 %v1351
    %1529 = vmatpush.bf16.msra.mxu0 %v1349
    %1530 = vmatpush.bf16.msra.mxu0 %v1347
    %1531 = vmatmul.bf16.gmra.mxu0 %v1065
    %v1532 = vpop.f32.mrf.mxu0
    %v1533 = vadd.f32 %v1520, %v1532
    %v1534 = vpop.f32.mrf.mxu0
    %1535 = vdwg.mxu0
    %1536 = vmatpush.bf16.msra.mxu0 %v1377
    %1537 = vmatpush.bf16.msra.mxu0 %v1375
    %1538 = vmatpush.bf16.msra.mxu0 %v1373
    %1539 = vmatpush.bf16.msra.mxu0 %v1371
    %1540 = vmatpush.bf16.msra.mxu0 %v1369
    %1541 = vmatpush.bf16.msra.mxu0 %v1367
    %1542 = vmatpush.bf16.msra.mxu0 %v1365
    %1543 = vmatpush.bf16.msra.mxu0 %v1363
    %1544 = vmatmul.bf16.gmra.mxu0 %v1066
    %v1545 = vpop.f32.mrf.mxu0
    %v1546 = vadd.f32 %v1533, %v1545
    %v1547 = vpop.f32.mrf.mxu0
    %1548 = vdwg.mxu0
    %1549 = vmatpush.bf16.msra.mxu0 %v1393
    %1550 = vmatpush.bf16.msra.mxu0 %v1391
    %1551 = vmatpush.bf16.msra.mxu0 %v1389
    %1552 = vmatpush.bf16.msra.mxu0 %v1387
    %1553 = vmatpush.bf16.msra.mxu0 %v1385
    %1554 = vmatpush.bf16.msra.mxu0 %v1383
    %1555 = vmatpush.bf16.msra.mxu0 %v1381
    %1556 = vmatpush.bf16.msra.mxu0 %v1379
    %1557 = vmatmul.bf16.gmra.mxu0 %v1067
    %v1558 = vpop.f32.mrf.mxu0
    %v1559 = vadd.f32 %v1546, %v1558
    %v1560 = vpop.f32.mrf.mxu0
    %1561 = vdwg.mxu0
    %v1562 = vtanh.pop %v1507
    %v1563 = vtanh.pop %v1559
    %v1564 = vpack.c.bf16 %v1562, %v1562
    %v1565 = vpack.c.bf16 %v1563, %v1563
    %v1566 = vld [vmem:[%s5] sm:$0xf]
    %v1567 = vld [vmem:[%s5 + $0x4] sm:$0xf]
    %v1568 = vld [vmem:[%s5 + $0x8] sm:$0xf]
    %v1569 = vld [vmem:[%s5 + $0xc] sm:$0xf]
    %v1570 = vld [vmem:[%s5 + $0x10] sm:$0xf]
    %v1571 = vld [vmem:[%s5 + $0x14] sm:$0xf]
    %v1572 = vld [vmem:[%s5 + $0x18] sm:$0xf]
    %v1573 = vld [vmem:[%s5 + $0x1c] sm:$0xf]
    %v1574 = vld [vmem:[%s5 + $0x20] sm:$0xf]
    %v1575 = vld [vmem:[%s5 + $0x24] sm:$0xf]
    %v1576 = vld [vmem:[%s5 + $0x28] sm:$0xf]
    %v1577 = vld [vmem:[%s5 + $0x2c] sm:$0xf]
    %v1578 = vld [vmem:[%s5 + $0x30] sm:$0xf]
    %v1579 = vld [vmem:[%s5 + $0x34] sm:$0xf]
    %v1580 = vld [vmem:[%s5 + $0x38] sm:$0xf]
    %v1581 = vld [vmem:[%s5 + $0x3c] sm:$0xf]
    %v1582 = vld [vmem:[%s5 + $0x40] sm:$0xf]
    %v1583 = vld [vmem:[%s5 + $0x44] sm:$0xf]
    %v1584 = vld [vmem:[%s5 + $0x48] sm:$0xf]
    %v1585 = vld [vmem:[%s5 + $0x4c] sm:$0xf]
    %v1586 = vld [vmem:[%s5 + $0x50] sm:$0xf]
    %v1587 = vld [vmem:[%s5 + $0x54] sm:$0xf]
    %v1588 = vld [vmem:[%s5 + $0x58] sm:$0xf]
    %v1589 = vld [vmem:[%s5 + $0x5c] sm:$0xf]
    %v1590 = vld [vmem:[%s5 + $0x60] sm:$0xf]
    %v1591 = vld [vmem:[%s5 + $0x64] sm:$0xf]
    %v1592 = vld [vmem:[%s5 + $0x68] sm:$0xf]
    %v1593 = vld [vmem:[%s5 + $0x6c] sm:$0xf]
    %v1594 = vld [vmem:[%s5 + $0x70] sm:$0xf]
    %v1595 = vld [vmem:[%s5 + $0x74] sm:$0xf]
    %v1596 = vld [vmem:[%s5 + $0x78] sm:$0xf]
    %v1597 = vld [vmem:[%s5 + $0x7c] sm:$0xf]
    %v1598 = vld [vmem:[%s6] sm:$0x1]
    %v1600 = vperm.slane %v1598, 0
    %v1634 = vunpack.c.l.b16 %v1566
    %v1635 = vunpack.c.l.b16 %v1567
    %v1636 = vunpack.c.l.b16 %v1568
    %v1637 = vunpack.c.l.b16 %v1569
    %v1638 = vunpack.c.l.b16 %v1570
    %v1639 = vunpack.c.l.b16 %v1571
    %v1640 = vunpack.c.l.b16 %v1572
    %v1641 = vunpack.c.l.b16 %v1573
    %v1642 = vunpack.c.l.b16 %v1574
    %v1643 = vunpack.c.l.b16 %v1575
    %v1644 = vunpack.c.l.b16 %v1576
    %v1645 = vunpack.c.l.b16 %v1577
    %v1646 = vunpack.c.l.b16 %v1578
    %v1647 = vunpack.c.l.b16 %v1579
    %v1648 = vunpack.c.l.b16 %v1580
    %v1649 = vunpack.c.l.b16 %v1581
    %v1650 = vunpack.c.l.b16 %v1582
    %v1651 = vunpack.c.l.b16 %v1583
    %v1652 = vunpack.c.l.b16 %v1584
    %v1653 = vunpack.c.l.b16 %v1585
    %v1654 = vunpack.c.l.b16 %v1586
    %v1655 = vunpack.c.l.b16 %v1587
    %v1656 = vunpack.c.l.b16 %v1588
    %v1657 = vunpack.c.l.b16 %v1589
    %v1658 = vunpack.c.l.b16 %v1590
    %v1659 = vunpack.c.l.b16 %v1591
    %v1660 = vunpack.c.l.b16 %v1592
    %v1661 = vunpack.c.l.b16 %v1593
    %v1662 = vunpack.c.l.b16 %v1594
    %v1663 = vunpack.c.l.b16 %v1595
    %v1664 = vunpack.c.l.b16 %v1596
    %v1665 = vunpack.c.l.b16 %v1597
    %v1666 = vpack.c.b16 %v1635, %v1634
    %v1667 = vpack.c.b16 %v1637, %v1636
    %v1668 = vpack.c.b16 %v1639, %v1638
    %v1669 = vpack.c.b16 %v1641, %v1640
    %v1670 = vpack.c.b16 %v1643, %v1642
    %v1671 = vpack.c.b16 %v1645, %v1644
    %v1672 = vpack.c.b16 %v1647, %v1646
    %v1673 = vpack.c.b16 %v1649, %v1648
    %v1674 = vpack.c.b16 %v1651, %v1650
    %v1675 = vpack.c.b16 %v1653, %v1652
    %v1676 = vpack.c.b16 %v1655, %v1654
    %v1677 = vpack.c.b16 %v1657, %v1656
    %v1678 = vpack.c.b16 %v1659, %v1658
    %v1679 = vpack.c.b16 %v1661, %v1660
    %v1680 = vpack.c.b16 %v1663, %v1662
    %v1681 = vpack.c.b16 %v1665, %v1664
    %1698 = vmatpush.bf16.msra.mxu0 %v1673
    %1699 = vmatpush.bf16.msra.mxu0 %v1672
    %1700 = vmatpush.bf16.msra.mxu0 %v1671
    %1701 = vmatpush.bf16.msra.mxu0 %v1670
    %1702 = vmatpush.bf16.msra.mxu0 %v1669
    %1703 = vmatpush.bf16.msra.mxu0 %v1668
    %1704 = vmatpush.bf16.msra.mxu0 %v1667
    %1705 = vmatpush.bf16.msra.mxu0 %v1666
    %1706 = vmatmul.bf16.gmra.mxu0 %v1564
    %v1707 = vpop.f32.mrf.mxu0
    %v1708 = vadd.f32 %v1600, %v1707
    %v1709 = vpop.f32.mrf.mxu0
    %1710 = vdwg.mxu0
    %1711 = vmatpush.bf16.msra.mxu0 %v1681
    %1712 = vmatpush.bf16.msra.mxu0 %v1680
    %1713 = vmatpush.bf16.msra.mxu0 %v1679
    %1714 = vmatpush.bf16.msra.mxu0 %v1678
    %1715 = vmatpush.bf16.msra.mxu0 %v1677
    %1716 = vmatpush.bf16.msra.mxu0 %v1676
    %1717 = vmatpush.bf16.msra.mxu0 %v1675
    %1718 = vmatpush.bf16.msra.mxu0 %v1674
    %1719 = vmatmul.bf16.gmra.mxu0 %v1565
    %v1720 = vpop.f32.mrf.mxu0
    %v1721 = vadd.f32 %v1708, %v1720
    %v1722 = vpop.f32.mrf.mxu0
    %1723 = vdwg.mxu0
    %v1724 = vtanh.pop %v1721
    %v1725 = vpack.c.bf16 %v1724, %v1724
    %v1726 = vld [vmem:[%s7] sm:$0xf]
    %v1727 = vld [vmem:[%s7 + $0x4] sm:$0xf]
    %v1728 = vld [vmem:[%s7 + $0x8] sm:$0xf]
    %v1729 = vld [vmem:[%s7 + $0xc] sm:$0xf]
    %v1730 = vld [vmem:[%s7 + $0x10] sm:$0xf]
    %v1731 = vld [vmem:[%s7 + $0x14] sm:$0xf]
    %v1732 = vld [vmem:[%s7 + $0x18] sm:$0xf]
    %v1733 = vld [vmem:[%s7 + $0x1c] sm:$0xf]
    %v1734 = vld [vmem:[%s7 + $0x20] sm:$0xf]
    %v1735 = vld [vmem:[%s7 + $0x24] sm:$0xf]
    %v1736 = vld [vmem:[%s7 + $0x28] sm:$0xf]
    %v1737 = vld [vmem:[%s7 + $0x2c] sm:$0xf]
    %v1738 = vld [vmem:[%s7 + $0x30] sm:$0xf]
    %v1739 = vld [vmem:[%s7 + $0x34] sm:$0xf]
    %v1740 = vld [vmem:[%s7 + $0x38] sm:$0xf]
    %v1741 = vld [vmem:[%s7 + $0x3c] sm:$0xf]
    %v1742 = vld [vmem:[%s8] sm:$0x1]
    %v1744 = vperm.slane %v1742, 0
    %v1762 = vunpack.c.l.b16 %v1726
    %v1763 = vunpack.c.l.b16 %v1727
    %v1764 = vunpack.c.l.b16 %v1728
    %v1765 = vunpack.c.l.b16 %v1729
    %v1766 = vunpack.c.l.b16 %v1730
    %v1767 = vunpack.c.l.b16 %v1731
    %v1768 = vunpack.c.l.b16 %v1732
    %v1769 = vunpack.c.l.b16 %v1733
    %v1770 = vunpack.c.l.b16 %v1734
    %v1771 = vunpack.c.l.b16 %v1735
    %v1772 = vunpack.c.l.b16 %v1736
    %v1773 = vunpack.c.l.b16 %v1737
    %v1774 = vunpack.c.l.b16 %v1738
    %v1775 = vunpack.c.l.b16 %v1739
    %v1776 = vunpack.c.l.b16 %v1740
    %v1777 = vunpack.c.l.b16 %v1741
    %v1778 = vpack.c.b16 %v1763, %v1762
    %v1779 = vpack.c.b16 %v1765, %v1764
    %v1780 = vpack.c.b16 %v1767, %v1766
    %v1781 = vpack.c.b16 %v1769, %v1768
    %v1782 = vpack.c.b16 %v1771, %v1770
    %v1783 = vpack.c.b16 %v1773, %v1772
    %v1784 = vpack.c.b16 %v1775, %v1774
    %v1785 = vpack.c.b16 %v1777, %v1776
    %1794 = vmatpush.bf16.msra.mxu0 %v1785
    %1795 = vmatpush.bf16.msra.mxu0 %v1784
    %1796 = vmatpush.bf16.msra.mxu0 %v1783
    %1797 = vmatpush.bf16.msra.mxu0 %v1782
    %1798 = vmatpush.bf16.msra.mxu0 %v1781
    %1799 = vmatpush.bf16.msra.mxu0 %v1780
    %1800 = vmatpush.bf16.msra.mxu0 %v1779
    %1801 = vmatpush.bf16.msra.mxu0 %v1778
    %1802 = vmatmul.bf16.gmra.mxu0 %v1725
    %v1803 = vpop.f32.mrf.mxu0
    %v1804 = vadd.f32 %v1744, %v1803
    %v1805 = vpop.f32.mrf.mxu0
    %1806 = vdwg.mxu0
    %v1807 = vtanh.pop %v1804
    %v1808 = vpack.c.bf16 %v1807, %v1807
    %v1809 = vld [vmem:[%s9] sm:$0xf]
    %v1810 = vld [vmem:[%s9 + $0x4] sm:$0xf]
    %v1811 = vld [vmem:[%s9 + $0x8] sm:$0xf]
    %v1812 = vld [vmem:[%s9 + $0xc] sm:$0xf]
    %v1813 = vld [vmem:[%s9 + $0x10] sm:$0xf]
    %v1814 = vld [vmem:[%s9 + $0x14] sm:$0xf]
    %v1815 = vld [vmem:[%s9 + $0x18] sm:$0xf]
    %v1816 = vld [vmem:[%s9 + $0x1c] sm:$0xf]
    %v1817 = vld [vmem:[%s10] sm:$0x1]
    %v1819 = vperm.slane %v1817, 0
    %v1829 = vunpack.c.l.b16 %v1809
    %v1830 = vunpack.c.l.b16 %v1810
    %v1831 = vunpack.c.l.b16 %v1811
    %v1832 = vunpack.c.l.b16 %v1812
    %v1833 = vunpack.c.l.b16 %v1813
    %v1834 = vunpack.c.l.b16 %v1814
    %v1835 = vunpack.c.l.b16 %v1815
    %v1836 = vunpack.c.l.b16 %v1816
    %v1837 = vpack.c.b16 %v1830, %v1829
    %v1838 = vpack.c.b16 %v1832, %v1831
    %v1839 = vpack.c.b16 %v1834, %v1833
    %v1840 = vpack.c.b16 %v1836, %v1835
    %vm1845 = vcmask 523264
    %v1847 = vsel %vm1845, %v1808, 0
    %1849 = vmatpush.bf16.msra.mxu0 0
    %1850 = vmatpush.bf16.msra.mxu0 0
    %1851 = vmatpush.bf16.msra.mxu0 0
    %1852 = vmatpush.bf16.msra.mxu0 0
    %1853 = vmatpush.bf16.msra.mxu0 %v1840
    %1854 = vmatpush.bf16.msra.mxu0 %v1839
    %1855 = vmatpush.bf16.msra.mxu0 %v1838
    %1856 = vmatpush.bf16.msra.mxu0 %v1837
    %1857 = vmatmul.bf16.gmra.mxu0 %v1847
    %v1858 = vpop.f32.mrf.mxu0
    %v1859 = vadd.f32 %v1819, %v1858
    %v1860 = vpop.f32.mrf.mxu0
    %1861 = vdwg.mxu0
    %1862 = vst [vmem:[%s12] sm:$0xff] %v1859
    // Predicated region
    $region50: #{my_classifier_forward.1} parent=1 // pred_check
      _
    $region51: #{my_classifier_forward.1} parent=1 // pred_check_branch
      %1864 = sbr.rel (0) target = $region53
    $region52: #{my_classifier_forward.1} parent=1 // pred_region
      %1866 = vsyncadd [#allocation4], 0
      %s1868 = sshll.u32 [#allocation5], 4
      %s1869 = int_to_ptr.vmem [resolvable:$true] %s1868
      %s1870 = sshll.u32 %s11, 4
      %s1871 = int_to_ptr.hbm [resolvable:$true] %s1870
      %1873 = dma.vmem_to_hbm [thread:$0]  %s1869, 512, %s1871, [#allocation4]
    $region53: #{my_classifier_forward.1} parent=1 // pred_fallthru
      _
    // Predicated region
    $region54: #{my_classifier_forward.1} parent=1 // pred_check
      _
    $region55: #{my_classifier_forward.1} parent=1 // pred_check_branch
      %1875 = sbr.rel (0) target = $region57
    $region56: #{my_classifier_forward.1} parent=1 // pred_region
      _
    $region57: #{my_classifier_forward.1} parent=1 // pred_fallthru
      _
    // Predicated region
    $region58: #{my_classifier_forward.1} parent=1 // pred_check
      _
    $region59: #{my_classifier_forward.1} parent=1 // pred_check_branch
      %1877 = sbr.rel (0) target = $region61
    $region60: #{my_classifier_forward.1} parent=1 // pred_region
      %1879 = dma.done [#allocation4], 512
    $region61: #{my_classifier_forward.1} parent=1 // pred_fallthru
      _
    // Predicated region
    $region62: #{my_classifier_forward.1} parent=1 // pred_check
      _
    $region63: #{my_classifier_forward.1} parent=1 // pred_check_branch
      %1881 = sbr.rel (0) target = $region65
    $region64: #{my_classifier_forward.1} parent=1 // pred_region
      _
    $region65: #{my_classifier_forward.1} parent=1 // pred_fallthru
      _
    %1882 = vsyncpa [#allocation3], 1
    %1883 = vsyncpa [#allocation4], 1

</llo_original>
